<compile_context>
chip_gen: v5e
topology: v5e:2x2
jax: 0.10.0
libtpu: 0.0.40
codegen_flags: <defaults>
</compile_context>

<pallas_src>
import functools

import jax
import jax.numpy as jnp
from jax.experimental import pallas as pl
from jax.experimental.pallas import tpu as pltpu

# ---- scaled-down MoCo hyper-parameters (module defaults: dim=256, K=3*256) ----
DIM = 128                    # feature dimension (lane-aligned)
K_QUEUE = 3 * DIM            # queue size; K % batch == 0 holds (384 % 16 == 0)
MOMENTUM = 0.999
TEMP = 0.07
HIDDEN = 128                 # synthetic-encoder hidden width (lane-aligned)
BATCH = 16                   # multiple of bf16 sublane pack -> aligned enqueue slab
IMG_C, IMG_H, IMG_W = 3, 16, 16
IN_DIM = IMG_C * IMG_H * IMG_W
TILE_K = 128                 # queue rows streamed per grid step (lane-dense l_neg tiles)
QUEUE_DTYPE = jnp.bfloat16   # queue stored bf16: l_neg is HBM-bandwidth bound at scale

assert K_QUEUE % TILE_K == 0 and K_QUEUE % BATCH == 0 and BATCH % 16 == 0


# ----------------------- fully fused MoCo training step -----------------------
def _moco_fused_kernel(ptr_ref,                                     # SMEM (1,) int32
                       xq_ref, xk_ref,                              # (N, IN_DIM) f32
                       w1q_ref, b1q_ref, w2q_ref, b2q_ref,          # query params (f32)
                       w1k_ref, b1k_ref, w2k_ref, b2k_ref,          # old key params (f32)
                       queue_ref,                                   # (TILE_K, DIM) bf16 tile
                       emb_ref, inter_ref, lpos_ref, lneg_ref,      # outputs
                       w1k_o_ref, b1k_o_ref, w2k_o_ref, b2k_o_ref,  # new key params (aliased)
                       queue_o_ref,                                 # (K, DIM) bf16 HBM (aliased)
                       qn_ref, kn_ref, dma_sem,                     # scratch
                       *, m, inv_t):
    step = pl.program_id(0)

    # ---- step 0: encoders + momentum update + normalize + l_pos (resident outputs) ----
    @pl.when(step == 0)
    def _():
        bf = lambda x: x.astype(jnp.bfloat16)          # MXU operands bf16, f32 accumulate

        # query encoder: embedding (post-ReLU), q, inter (pre-ReLU)
        pre_q = jnp.dot(bf(xq_ref[...]), bf(w1q_ref[...]),
                        preferred_element_type=jnp.float32) + b1q_ref[...]
        h_q = jnp.maximum(pre_q, 0.0)
        q = jnp.dot(bf(h_q), bf(w2q_ref[...]),
                    preferred_element_type=jnp.float32) + b2q_ref[...]
        emb_ref[...] = h_q
        inter_ref[...] = pre_q

        # momentum update of the key encoder (torch.no_grad), kept in f32
        w1k = w1k_ref[...] * m + w1q_ref[...] * (1.0 - m)
        b1k = b1k_ref[...] * m + b1q_ref[...] * (1.0 - m)
        w2k = w2k_ref[...] * m + w2q_ref[...] * (1.0 - m)
        b2k = b2k_ref[...] * m + b2q_ref[...] * (1.0 - m)
        w1k_o_ref[...] = w1k
        b1k_o_ref[...] = b1k
        w2k_o_ref[...] = w2k
        b2k_o_ref[...] = b2k

        # key encoder on the *updated* params straight from VMEM (no HBM round trip)
        h_k = jnp.maximum(jnp.dot(bf(xk_ref[...]), bf(w1k),
                                  preferred_element_type=jnp.float32) + b1k, 0.0)
        k = jnp.dot(bf(h_k), bf(w2k), preferred_element_type=jnp.float32) + b2k

        # F.normalize(x, dim=1): x * rsqrt(max(||x||^2, eps^2)), eps = 1e-12 (f32, EUP)
        qn = q * jax.lax.rsqrt(jnp.maximum(jnp.sum(q * q, axis=1, keepdims=True), 1e-24))
        kn = k * jax.lax.rsqrt(jnp.maximum(jnp.sum(k * k, axis=1, keepdims=True), 1e-24))

        lpos_ref[...] = jnp.sum(qn * kn, axis=1, keepdims=True) * inv_t
        qn_ref[...] = qn.astype(qn_ref.dtype)          # bf16 MXU operand for every K tile
        kn_ref[...] = kn.astype(kn_ref.dtype)          # enqueue payload in queue dtype

    # ---- every step: one lane-dense l_neg tile; contract on dim of the (K, dim) queue ----
    lneg_ref[...] = jax.lax.dot_general(
        qn_ref[...], queue_ref[...],
        dimension_numbers=(((1,), (1,)), ((), ())),
        preferred_element_type=jnp.float32) * inv_t

    # ---- last step: dequeue & enqueue IN PLACE -- only the N new rows go back to HBM.
    #      All queue-tile reads of this grid have completed, so the write cannot be
    #      observed by l_neg (matches the module's queue.clone().detach() semantics). ----
    @pl.when(step == pl.num_programs(0) - 1)
    def _():
        pl.debug_check(ptr_ref[0] % BATCH == 0, "queue_ptr must be a multiple of batch")
        ptr = pl.multiple_of(ptr_ref[0], BATCH)        # ptr advances by BATCH, K % BATCH == 0
        cp = pltpu.make_async_copy(kn_ref,
                                   queue_o_ref.at[pl.ds(ptr, BATCH)],
                                   dma_sem.at[0])
        cp.start()
        cp.wait()


def _moco_fused_call(xq, xk, params_q, params_k, queue, queue_ptr):
    n = xq.shape[0]
    w1q, b1q, w2q, b2q = params_q
    w1k, b1k, w2k, b2k = params_k

    def _full(a):                                      # whole array, resident in VMEM
        return pl.BlockSpec(a.shape, lambda i: (0,) * a.ndim)

    grid = (K_QUEUE // TILE_K,)
    in_specs = [
        pl.BlockSpec(memory_space=pltpu.MemorySpace.SMEM),     # queue_ptr
        _full(xq), _full(xk),
        _full(w1q), _full(b1q), _full(w2q), _full(b2q),
        _full(w1k), _full(b1k), _full(w2k), _full(b2k),
        pl.BlockSpec((TILE_K, DIM), lambda i: (i, 0)),         # streamed bf16 queue tile
    ]
    out_specs = (
        pl.BlockSpec((n, HIDDEN), lambda i: (0, 0)),           # embedding
        pl.BlockSpec((n, HIDDEN), lambda i: (0, 0)),           # inter
        pl.BlockSpec((n, 1), lambda i: (0, 0)),                # l_pos / T
        pl.BlockSpec((n, TILE_K), lambda i: (0, i)),           # l_neg / T (lane-dense tiles)
        _full(w1k), _full(b1k), _full(w2k), _full(b2k),        # new key params
        pl.BlockSpec(memory_space=pl.ANY),                     # queue: in-place rows only
    )
    out_shape = (
        jax.ShapeDtypeStruct((n, HIDDEN), jnp.float32),
        jax.ShapeDtypeStruct((n, HIDDEN), jnp.float32),
        jax.ShapeDtypeStruct((n, 1), jnp.float32),
        jax.ShapeDtypeStruct((n, K_QUEUE), jnp.float32),
        jax.ShapeDtypeStruct(w1k.shape, w1k.dtype),
        jax.ShapeDtypeStruct(b1k.shape, b1k.dtype),
        jax.ShapeDtypeStruct(w2k.shape, w2k.dtype),
        jax.ShapeDtypeStruct(b2k.shape, b2k.dtype),
        jax.ShapeDtypeStruct(queue.shape, queue.dtype),        # updated queue (K, dim) bf16
    )
    return pl.pallas_call(
        functools.partial(_moco_fused_kernel, m=MOMENTUM, inv_t=1.0 / TEMP),
        grid=grid,
        in_specs=in_specs,
        out_specs=out_specs,
        out_shape=out_shape,
        scratch_shapes=[
            pltpu.VMEM((n, DIM), jnp.bfloat16),     # qn (bf16 matmul operand)
            pltpu.VMEM((n, DIM), queue.dtype),      # kn, enqueue payload
            pltpu.SemaphoreType.DMA((1,)),          # enqueue-DMA completion
        ],
        # old key params -> new key params (in place); queue -> queue (in-place enqueue)
        input_output_aliases={7: 4, 8: 5, 9: 6, 10: 7, 11: 8},
        compiler_params=pltpu.CompilerParams(
            dimension_semantics=("arbitrary",),     # see header: must stay sequential here
            vmem_limit_bytes=32 * 1024 * 1024,
        ),
    )(queue_ptr, xq, xk, w1q, b1q, w2q, b2q, w1k, b1k, w2k, b2k, queue)


# ------------------------------- MoCo forward -------------------------------
@functools.partial(jax.jit, donate_argnums=(3, 4))    # params_k and queue are carried state
def moco_forward(im_q, im_k, params_q, params_k, queue, queue_ptr):
    n = im_q.shape[0]
    xq = im_q.reshape(n, -1)
    xk = im_k.reshape(n, -1)

    (embedding, inter, l_pos, l_neg,
     w1k_n, b1k_n, w2k_n, b2k_n, new_queue) = _moco_fused_call(
        xq, xk, params_q, params_k, queue, queue_ptr)

    # NOTE: at real scale feed (l_pos, l_neg) straight to the loss instead of
    # materialising the (N, 1+K) concat (saves a full extra HBM copy of l_neg).
    logits = jnp.concatenate([l_pos, l_neg], axis=1)      # (N, 1+K), already / T
    labels = jnp.zeros((n,), dtype=jnp.int32)
    new_params_k = (w1k_n, b1k_n, w2k_n, b2k_n)
    new_ptr = (queue_ptr + n) % K_QUEUE

    # TODO(synk): concat_all_gather / DDP batch shuffle-unshuffle omitted (single device;
    #             not exercised by this module's single-process forward).
    return embedding, logits, labels, inter, new_params_k, new_queue, new_ptr


# --------------------------- plain-JAX reference ---------------------------
def _ref_forward(im_q, im_k, params_q, params_k, queue_rows, ptr):
    """Mirrors the kernel's bf16-MXU / f32-accumulate arithmetic."""
    bf = lambda x: x.astype(jnp.bfloat16)
    xq = im_q.reshape(im_q.shape[0], -1)
    xk = im_k.reshape(im_k.shape[0], -1)
    w1q, b1q, w2q, b2q = params_q
    pre_q = jnp.dot(bf(xq), bf(w1q), preferred_element_type=jnp.float32) + b1q
    h_q = jnp.maximum(pre_q, 0.0)
    q = jnp.dot(bf(h_q), bf(w2q), preferred_element_type=jnp.float32) + b2q
    new_k = tuple(pk * MOMENTUM + pq * (1.0 - MOMENTUM)
                  for pq, pk in zip(params_q, params_k))
    w1k, b1k, w2k, b2k = new_k
    h_k = jnp.maximum(jnp.dot(bf(xk), bf(w1k), preferred_element_type=jnp.float32) + b1k, 0.0)
    k = jnp.dot(bf(h_k), bf(w2k), preferred_element_type=jnp.float32) + b2k
    qn = q / jnp.maximum(jnp.linalg.norm(q, axis=1, keepdims=True), 1e-12)
    kn = k / jnp.maximum(jnp.linalg.norm(k, axis=1, keepdims=True), 1e-12)
    l_pos = jnp.sum(qn * kn, axis=1, keepdims=True)
    l_neg = jax.lax.dot_general(bf(qn), queue_rows,
                                dimension_numbers=(((1,), (1,)), ((), ())),
                                preferred_element_type=jnp.float32)
    logits = jnp.concatenate([l_pos, l_neg], axis=1) / TEMP
    new_queue = queue_rows.at[ptr:ptr + kn.shape[0]].set(kn.astype(queue_rows.dtype))
    return h_q, logits, pre_q, new_k, new_queue


# ----------------------------------- main -----------------------------------
if __name__ == "__main__":
    key = jax.random.PRNGKey(0)
    k1, k2, k3, k4, k5 = jax.random.split(key, 5)

    im_q = jax.random.normal(k1, (BATCH, IMG_C, IMG_H, IMG_W), jnp.float32)
    im_k = jax.random.normal(k2, (BATCH, IMG_C, IMG_H, IMG_W), jnp.float32)

    # deterministic synthetic encoder params (encoder_k starts as a copy of encoder_q)
    w1 = jax.random.normal(k3, (IN_DIM, HIDDEN), jnp.float32) * 0.02
    b1 = jnp.zeros((1, HIDDEN), jnp.float32)
    w2 = jax.random.normal(k4, (HIDDEN, DIM), jnp.float32) * 0.02
    b2 = jnp.zeros((1, DIM), jnp.float32)
    params_q = (w1, b1, w2, b2)
    params_k = tuple(jnp.array(p) for p in params_q)

    # queue buffer: randn(dim, K) normalized along dim=0 (as in the module), stored
    # row-major as (K, dim) in bf16 so l_neg is a pure HBM stream and the enqueue is
    # a contiguous, 16-row-aligned slab.
    queue_dk = jax.random.normal(k5, (DIM, K_QUEUE), jnp.float32)
    queue_dk = queue_dk / jnp.linalg.norm(queue_dk, axis=0, keepdims=True)
    queue = jnp.asarray(queue_dk.T, dtype=QUEUE_DTYPE)            # (K, dim)
    queue_ptr = jnp.zeros((1,), jnp.int32)

    # plain-JAX reference FIRST: params_k and queue are donated to the fused call below.
    ref_emb, ref_logits, ref_inter, ref_pk, ref_queue = _ref_forward(
        im_q, im_k, params_q, params_k, queue, 0)

    out = moco_forward(im_q, im_k, params_q, params_k, queue, queue_ptr)
    embedding, logits, labels, inter, new_params_k, new_queue, new_ptr = out
    jax.block_until_ready(out)

    # shape / sanity checks
    assert embedding.shape == (BATCH, HIDDEN)
    assert logits.shape == (BATCH, K_QUEUE + 1)
    assert labels.shape == (BATCH,)
    assert inter.shape == (BATCH, HIDDEN)
    assert new_queue.shape == (K_QUEUE, DIM) and new_queue.dtype == QUEUE_DTYPE
    assert int(new_ptr[0]) == BATCH % K_QUEUE
    assert bool(jnp.all(jnp.isfinite(logits)))

    # numerical checks against the reference
    assert jnp.allclose(embedding, ref_emb, rtol=2e-2, atol=2e-2)
    assert jnp.allclose(inter, ref_inter, rtol=2e-2, atol=2e-2)
    assert jnp.allclose(logits, ref_logits, rtol=2e-2, atol=2e-2)
    assert jnp.allclose(new_queue.astype(jnp.float32),
                        ref_queue.astype(jnp.float32), rtol=2e-2, atol=2e-2)
    for a, b in zip(new_params_k, ref_pk):
        assert jnp.allclose(a, b, rtol=1e-5, atol=1e-6)

    print("KERNEL_OK")
</pallas_src>

<mosaic_0001>
module attributes {stable_mosaic.version = 11 : i64} {
  func.func @_moco_fused_kernel(%arg0: i32, %arg1: memref<1xi32, #tpu.memory_space<smem>>, %arg2: memref<16x768xf32, #tpu.memory_space<vmem>>, %arg3: memref<16x768xf32, #tpu.memory_space<vmem>>, %arg4: memref<768x128xf32, #tpu.memory_space<vmem>>, %arg5: memref<1x128xf32, #tpu.memory_space<vmem>>, %arg6: memref<128x128xf32, #tpu.memory_space<vmem>>, %arg7: memref<1x128xf32, #tpu.memory_space<vmem>>, %arg8: memref<768x128xf32, #tpu.memory_space<vmem>>, %arg9: memref<1x128xf32, #tpu.memory_space<vmem>>, %arg10: memref<128x128xf32, #tpu.memory_space<vmem>>, %arg11: memref<1x128xf32, #tpu.memory_space<vmem>>, %arg12: memref<128x128xbf16, #tpu.memory_space<vmem>>, %arg13: memref<16x128xf32, #tpu.memory_space<vmem>>, %arg14: memref<16x128xf32, #tpu.memory_space<vmem>>, %arg15: memref<16x1xf32, #tpu.memory_space<vmem>>, %arg16: memref<16x128xf32, #tpu.memory_space<vmem>>, %arg17: memref<768x128xf32, #tpu.memory_space<vmem>>, %arg18: memref<1x128xf32, #tpu.memory_space<vmem>>, %arg19: memref<128x128xf32, #tpu.memory_space<vmem>>, %arg20: memref<1x128xf32, #tpu.memory_space<vmem>>, %arg21: memref<384x128xbf16, #tpu.memory_space<any>>, %arg22: memref<16x128xbf16, #tpu.memory_space<vmem>>, %arg23: memref<16x128xbf16, #tpu.memory_space<vmem>>, %arg24: memref<1x!tpu.dma_semaphore, #tpu.memory_space<semaphore_mem>>) attributes {dimension_semantics = [#tpu.dimension_semantics<arbitrary>], iteration_bounds = array<i64: 3>, scalar_prefetch = 0 : i64, scratch_operands = 3 : i64, tpu.core_type = #tpu.core_type<tc>, window_params = [{transform_indices = @transform_0, window_bounds = array<i64: 1>}, {pipeline_mode = #tpu.pipeline_mode<synchronous>, transform_indices = @transform_1, window_bounds = array<i64: 16, 768>}, {pipeline_mode = #tpu.pipeline_mode<synchronous>, transform_indices = @transform_2, window_bounds = array<i64: 16, 768>}, {pipeline_mode = #tpu.pipeline_mode<synchronous>, transform_indices = @transform_3, window_bounds = array<i64: 768, 128>}, {pipeline_mode = #tpu.pipeline_mode<synchronous>, transform_indices = @transform_4, window_bounds = array<i64: 1, 128>}, {pipeline_mode = #tpu.pipeline_mode<synchronous>, transform_indices = @transform_5, window_bounds = array<i64: 128, 128>}, {pipeline_mode = #tpu.pipeline_mode<synchronous>, transform_indices = @transform_6, window_bounds = array<i64: 1, 128>}, {pipeline_mode = #tpu.pipeline_mode<synchronous>, transform_indices = @transform_7, window_bounds = array<i64: 768, 128>}, {pipeline_mode = #tpu.pipeline_mode<synchronous>, transform_indices = @transform_8, window_bounds = array<i64: 1, 128>}, {pipeline_mode = #tpu.pipeline_mode<synchronous>, transform_indices = @transform_9, window_bounds = array<i64: 128, 128>}, {pipeline_mode = #tpu.pipeline_mode<synchronous>, transform_indices = @transform_10, window_bounds = array<i64: 1, 128>}, {transform_indices = @transform_11, window_bounds = array<i64: 128, 128>}, {pipeline_mode = #tpu.pipeline_mode<synchronous>, transform_indices = @transform_12, window_bounds = array<i64: 16, 128>}, {pipeline_mode = #tpu.pipeline_mode<synchronous>, transform_indices = @transform_13, window_bounds = array<i64: 16, 128>}, {pipeline_mode = #tpu.pipeline_mode<synchronous>, transform_indices = @transform_14, window_bounds = array<i64: 16, 1>}, {transform_indices = @transform_15, window_bounds = array<i64: 16, 128>}, {pipeline_mode = #tpu.pipeline_mode<synchronous>, transform_indices = @transform_16, window_bounds = array<i64: 768, 128>}, {pipeline_mode = #tpu.pipeline_mode<synchronous>, transform_indices = @transform_17, window_bounds = array<i64: 1, 128>}, {pipeline_mode = #tpu.pipeline_mode<synchronous>, transform_indices = @transform_18, window_bounds = array<i64: 128, 128>}, {pipeline_mode = #tpu.pipeline_mode<synchronous>, transform_indices = @transform_19, window_bounds = array<i64: 1, 128>}, {}]} {
    %c0_i32 = arith.constant 0 : i32
    %0 = arith.cmpi eq, %arg0, %c0_i32 : i32
    %1 = arith.extui %0 : i1 to i32
    %c0_i32_0 = arith.constant 0 : i32
    %2 = arith.cmpi ne, %1, %c0_i32_0 : i32
    scf.if %2 {
      %c0_8 = arith.constant 0 : index
      %c0_9 = arith.constant 0 : index
      %12 = vector.load %arg2[%c0_8, %c0_9] : memref<16x768xf32, #tpu.memory_space<vmem>>, vector<16x768xf32>
      %13 = arith.truncf %12 : vector<16x768xf32> to vector<16x768xbf16>
      %c0_10 = arith.constant 0 : index
      %c0_11 = arith.constant 0 : index
      %14 = vector.load %arg4[%c0_10, %c0_11] : memref<768x128xf32, #tpu.memory_space<vmem>>, vector<768x128xf32>
      %15 = arith.truncf %14 : vector<768x128xf32> to vector<768x128xbf16>
      %cst_12 = arith.constant dense<0.000000e+00> : vector<16x128xf32>
      %16 = tpu.matmul %13, %15, %cst_12 {dimension_numbers = #tpu.dot_dimension_numbers<[1], [0], [0], [1], [0, 0, 1, 1], [], []>} : vector<16x768xbf16>, vector<768x128xbf16>, vector<16x128xf32> -> vector<16x128xf32>
      %c0_13 = arith.constant 0 : index
      %c0_14 = arith.constant 0 : index
      %17 = vector.load %arg5[%c0_13, %c0_14] : memref<1x128xf32, #tpu.memory_space<vmem>>, vector<1x128xf32>
      %18 = vector.broadcast %17 : vector<1x128xf32> to vector<16x128xf32>
      %19 = arith.addf %16, %18 : vector<16x128xf32>
      %cst_15 = arith.constant 0.000000e+00 : f32
      %20 = vector.broadcast %cst_15 : f32 to vector<16x128xf32>
      %21 = arith.maximumf %19, %20 : vector<16x128xf32>
      %22 = arith.truncf %21 : vector<16x128xf32> to vector<16x128xbf16>
      %c0_16 = arith.constant 0 : index
      %c0_17 = arith.constant 0 : index
      %23 = vector.load %arg6[%c0_16, %c0_17] : memref<128x128xf32, #tpu.memory_space<vmem>>, vector<128x128xf32>
      %24 = arith.truncf %23 : vector<128x128xf32> to vector<128x128xbf16>
      %cst_18 = arith.constant dense<0.000000e+00> : vector<16x128xf32>
      %25 = tpu.matmul %22, %24, %cst_18 {dimension_numbers = #tpu.dot_dimension_numbers<[1], [0], [0], [1], [0, 0, 1, 1], [], []>} : vector<16x128xbf16>, vector<128x128xbf16>, vector<16x128xf32> -> vector<16x128xf32>
      %c0_19 = arith.constant 0 : index
      %c0_20 = arith.constant 0 : index
      %26 = vector.load %arg7[%c0_19, %c0_20] : memref<1x128xf32, #tpu.memory_space<vmem>>, vector<1x128xf32>
      %27 = vector.broadcast %26 : vector<1x128xf32> to vector<16x128xf32>
      %28 = arith.addf %25, %27 : vector<16x128xf32>
      %c0_21 = arith.constant 0 : index
      %c0_22 = arith.constant 0 : index
      %29 = vector.load %arg13[%c0_21, %c0_22] : memref<16x128xf32, #tpu.memory_space<vmem>>, vector<16x128xf32>
      tpu.vector_store %arg13[%c0_21, %c0_22], %21 {strides = array<i32>} : memref<16x128xf32, #tpu.memory_space<vmem>>, vector<16x128xf32>,
      %c0_23 = arith.constant 0 : index
      %c0_24 = arith.constant 0 : index
      %30 = vector.load %arg14[%c0_23, %c0_24] : memref<16x128xf32, #tpu.memory_space<vmem>>, vector<16x128xf32>
      tpu.vector_store %arg14[%c0_23, %c0_24], %19 {strides = array<i32>} : memref<16x128xf32, #tpu.memory_space<vmem>>, vector<16x128xf32>,
      %c0_25 = arith.constant 0 : index
      %c0_26 = arith.constant 0 : index
      %31 = vector.load %arg8[%c0_25, %c0_26] : memref<768x128xf32, #tpu.memory_space<vmem>>, vector<768x128xf32>
      %cst_27 = arith.constant 9.990000e-01 : f32
      %32 = vector.broadcast %cst_27 : f32 to vector<768x128xf32>
      %33 = arith.mulf %31, %32 : vector<768x128xf32>
      %c0_28 = arith.constant 0 : index
      %c0_29 = arith.constant 0 : index
      %34 = vector.load %arg4[%c0_28, %c0_29] : memref<768x128xf32, #tpu.memory_space<vmem>>, vector<768x128xf32>
      %cst_30 = arith.constant 1.000000e-03 : f32
      %35 = vector.broadcast %cst_30 : f32 to vector<768x128xf32>
      %36 = arith.mulf %34, %35 : vector<768x128xf32>
      %37 = arith.addf %33, %36 : vector<768x128xf32>
      %c0_31 = arith.constant 0 : index
      %c0_32 = arith.constant 0 : index
      %38 = vector.load %arg9[%c0_31, %c0_32] : memref<1x128xf32, #tpu.memory_space<vmem>>, vector<1x128xf32>
      %cst_33 = arith.constant 9.990000e-01 : f32
      %39 = vector.broadcast %cst_33 : f32 to vector<1x128xf32>
      %40 = arith.mulf %38, %39 : vector<1x128xf32>
      %c0_34 = arith.constant 0 : index
      %c0_35 = arith.constant 0 : index
      %41 = vector.load %arg5[%c0_34, %c0_35] : memref<1x128xf32, #tpu.memory_space<vmem>>, vector<1x128xf32>
      %cst_36 = arith.constant 1.000000e-03 : f32
      %42 = vector.broadcast %cst_36 : f32 to vector<1x128xf32>
      %43 = arith.mulf %41, %42 : vector<1x128xf32>
      %44 = arith.addf %40, %43 : vector<1x128xf32>
      %c0_37 = arith.constant 0 : index
      %c0_38 = arith.constant 0 : index
      %45 = vector.load %arg10[%c0_37, %c0_38] : memref<128x128xf32, #tpu.memory_space<vmem>>, vector<128x128xf32>
      %cst_39 = arith.constant 9.990000e-01 : f32
      %46 = vector.broadcast %cst_39 : f32 to vector<128x128xf32>
      %47 = arith.mulf %45, %46 : vector<128x128xf32>
      %c0_40 = arith.constant 0 : index
      %c0_41 = arith.constant 0 : index
      %48 = vector.load %arg6[%c0_40, %c0_41] : memref<128x128xf32, #tpu.memory_space<vmem>>, vector<128x128xf32>
      %cst_42 = arith.constant 1.000000e-03 : f32
      %49 = vector.broadcast %cst_42 : f32 to vector<128x128xf32>
      %50 = arith.mulf %48, %49 : vector<128x128xf32>
      %51 = arith.addf %47, %50 : vector<128x128xf32>
      %c0_43 = arith.constant 0 : index
      %c0_44 = arith.constant 0 : index
      %52 = vector.load %arg11[%c0_43, %c0_44] : memref<1x128xf32, #tpu.memory_space<vmem>>, vector<1x128xf32>
      %cst_45 = arith.constant 9.990000e-01 : f32
      %53 = vector.broadcast %cst_45 : f32 to vector<1x128xf32>
      %54 = arith.mulf %52, %53 : vector<1x128xf32>
      %c0_46 = arith.constant 0 : index
      %c0_47 = arith.constant 0 : index
      %55 = vector.load %arg7[%c0_46, %c0_47] : memref<1x128xf32, #tpu.memory_space<vmem>>, vector<1x128xf32>
      %cst_48 = arith.constant 1.000000e-03 : f32
      %56 = vector.broadcast %cst_48 : f32 to vector<1x128xf32>
      %57 = arith.mulf %55, %56 : vector<1x128xf32>
      %58 = arith.addf %54, %57 : vector<1x128xf32>
      %c0_49 = arith.constant 0 : index
      %c0_50 = arith.constant 0 : index
      %59 = vector.load %arg17[%c0_49, %c0_50] : memref<768x128xf32, #tpu.memory_space<vmem>>, vector<768x128xf32>
      tpu.vector_store %arg17[%c0_49, %c0_50], %37 {strides = array<i32>} : memref<768x128xf32, #tpu.memory_space<vmem>>, vector<768x128xf32>,
      %c0_51 = arith.constant 0 : index
      %c0_52 = arith.constant 0 : index
      %60 = vector.load %arg18[%c0_51, %c0_52] : memref<1x128xf32, #tpu.memory_space<vmem>>, vector<1x128xf32>
      tpu.vector_store %arg18[%c0_51, %c0_52], %44 {strides = array<i32>} : memref<1x128xf32, #tpu.memory_space<vmem>>, vector<1x128xf32>,
      %c0_53 = arith.constant 0 : index
      %c0_54 = arith.constant 0 : index
      %61 = vector.load %arg19[%c0_53, %c0_54] : memref<128x128xf32, #tpu.memory_space<vmem>>, vector<128x128xf32>
      tpu.vector_store %arg19[%c0_53, %c0_54], %51 {strides = array<i32>} : memref<128x128xf32, #tpu.memory_space<vmem>>, vector<128x128xf32>,
      %c0_55 = arith.constant 0 : index
      %c0_56 = arith.constant 0 : index
      %62 = vector.load %arg20[%c0_55, %c0_56] : memref<1x128xf32, #tpu.memory_space<vmem>>, vector<1x128xf32>
      tpu.vector_store %arg20[%c0_55, %c0_56], %58 {strides = array<i32>} : memref<1x128xf32, #tpu.memory_space<vmem>>, vector<1x128xf32>,
      %c0_57 = arith.constant 0 : index
      %c0_58 = arith.constant 0 : index
      %63 = vector.load %arg3[%c0_57, %c0_58] : memref<16x768xf32, #tpu.memory_space<vmem>>, vector<16x768xf32>
      %64 = arith.truncf %63 : vector<16x768xf32> to vector<16x768xbf16>
      %65 = arith.truncf %37 : vector<768x128xf32> to vector<768x128xbf16>
      %cst_59 = arith.constant dense<0.000000e+00> : vector<16x128xf32>
      %66 = tpu.matmul %64, %65, %cst_59 {dimension_numbers = #tpu.dot_dimension_numbers<[1], [0], [0], [1], [0, 0, 1, 1], [], []>} : vector<16x768xbf16>, vector<768x128xbf16>, vector<16x128xf32> -> vector<16x128xf32>
      %67 = vector.broadcast %44 : vector<1x128xf32> to vector<16x128xf32>
      %68 = arith.addf %66, %67 : vector<16x128xf32>
      %cst_60 = arith.constant 0.000000e+00 : f32
      %69 = vector.broadcast %cst_60 : f32 to vector<16x128xf32>
      %70 = arith.maximumf %68, %69 : vector<16x128xf32>
      %71 = arith.truncf %70 : vector<16x128xf32> to vector<16x128xbf16>
      %72 = arith.truncf %51 : vector<128x128xf32> to vector<128x128xbf16>
      %cst_61 = arith.constant dense<0.000000e+00> : vector<16x128xf32>
      %73 = tpu.matmul %71, %72, %cst_61 {dimension_numbers = #tpu.dot_dimension_numbers<[1], [0], [0], [1], [0, 0, 1, 1], [], []>} : vector<16x128xbf16>, vector<128x128xbf16>, vector<16x128xf32> -> vector<16x128xf32>
      %74 = vector.broadcast %58 : vector<1x128xf32> to vector<16x128xf32>
      %75 = arith.addf %73, %74 : vector<16x128xf32>
      %76 = arith.mulf %28, %28 : vector<16x128xf32>
      %cst_62 = arith.constant dense<0.000000e+00> : vector<16xf32>
      %77 = vector.multi_reduction <add>, %76, %cst_62 [1] : vector<16x128xf32> to vector<16xf32>
      %78 = vector.shape_cast %77 : vector<16xf32> to vector<16x1xf32>
      %cst_63 = arith.constant 1.000000e-24 : f32
      %79 = vector.broadcast %cst_63 : f32 to vector<16x1xf32>
      %80 = arith.maximumf %78, %79 : vector<16x1xf32>
      %81 = math.rsqrt %80 : vector<16x1xf32>
      %82 = vector.broadcast %81 : vector<16x1xf32> to vector<16x128xf32>
      %83 = arith.mulf %28, %82 : vector<16x128xf32>
      %84 = arith.mulf %75, %75 : vector<16x128xf32>
      %cst_64 = arith.constant dense<0.000000e+00> : vector<16xf32>
      %85 = vector.multi_reduction <add>, %84, %cst_64 [1] : vector<16x128xf32> to vector<16xf32>
      %86 = vector.shape_cast %85 : vector<16xf32> to vector<16x1xf32>
      %cst_65 = arith.constant 1.000000e-24 : f32
      %87 = vector.broadcast %cst_65 : f32 to vector<16x1xf32>
      %88 = arith.maximumf %86, %87 : vector<16x1xf32>
      %89 = math.rsqrt %88 : vector<16x1xf32>
      %90 = vector.broadcast %89 : vector<16x1xf32> to vector<16x128xf32>
      %91 = arith.mulf %75, %90 : vector<16x128xf32>
      %92 = arith.mulf %83, %91 : vector<16x128xf32>
      %cst_66 = arith.constant dense<0.000000e+00> : vector<16xf32>
      %93 = vector.multi_reduction <add>, %92, %cst_66 [1] : vector<16x128xf32> to vector<16xf32>
      %94 = vector.shape_cast %93 : vector<16xf32> to vector<16x1xf32>
      %cst_67 = arith.constant 14.2857141 : f32
      %95 = vector.broadcast %cst_67 : f32 to vector<16x1xf32>
      %96 = arith.mulf %94, %95 : vector<16x1xf32>
      %c0_68 = arith.constant 0 : index
      %c0_69 = arith.constant 0 : index
      %97 = vector.load %arg15[%c0_68, %c0_69] : memref<16x1xf32, #tpu.memory_space<vmem>>, vector<16x1xf32>
      tpu.vector_store %arg15[%c0_68, %c0_69], %96 {strides = array<i32>} : memref<16x1xf32, #tpu.memory_space<vmem>>, vector<16x1xf32>,
      %98 = arith.truncf %83 : vector<16x128xf32> to vector<16x128xbf16>
      %c0_70 = arith.constant 0 : index
      %c0_71 = arith.constant 0 : index
      %99 = vector.load %arg22[%c0_70, %c0_71] : memref<16x128xbf16, #tpu.memory_space<vmem>>, vector<16x128xbf16>
      tpu.vector_store %arg22[%c0_70, %c0_71], %98 {strides = array<i32>} : memref<16x128xbf16, #tpu.memory_space<vmem>>, vector<16x128xbf16>,
      %100 = arith.truncf %91 : vector<16x128xf32> to vector<16x128xbf16>
      %c0_72 = arith.constant 0 : index
      %c0_73 = arith.constant 0 : index
      %101 = vector.load %arg23[%c0_72, %c0_73] : memref<16x128xbf16, #tpu.memory_space<vmem>>, vector<16x128xbf16>
      tpu.vector_store %arg23[%c0_72, %c0_73], %100 {strides = array<i32>} : memref<16x128xbf16, #tpu.memory_space<vmem>>, vector<16x128xbf16>,
    } else {
    }
    %c0 = arith.constant 0 : index
    %c0_1 = arith.constant 0 : index
    %3 = vector.load %arg22[%c0, %c0_1] : memref<16x128xbf16, #tpu.memory_space<vmem>>, vector<16x128xbf16>
    %c0_2 = arith.constant 0 : index
    %c0_3 = arith.constant 0 : index
    %4 = vector.load %arg12[%c0_2, %c0_3] : memref<128x128xbf16, #tpu.memory_space<vmem>>, vector<128x128xbf16>
    %cst = arith.constant dense<0.000000e+00> : vector<16x128xf32>
    %5 = tpu.matmul %3, %4, %cst {dimension_numbers = #tpu.dot_dimension_numbers<[1], [1], [0], [0], [0, 0, 1, 0], [], []>} : vector<16x128xbf16>, vector<128x128xbf16>, vector<16x128xf32> -> vector<16x128xf32>
    %cst_4 = arith.constant 14.2857141 : f32
    %6 = vector.broadcast %cst_4 : f32 to vector<16x128xf32>
    %7 = arith.mulf %5, %6 : vector<16x128xf32>
    %c0_5 = arith.constant 0 : index
    %c0_6 = arith.constant 0 : index
    %8 = vector.load %arg16[%c0_5, %c0_6] : memref<16x128xf32, #tpu.memory_space<vmem>>, vector<16x128xf32>
    tpu.vector_store %arg16[%c0_5, %c0_6], %7 {strides = array<i32>} : memref<16x128xf32, #tpu.memory_space<vmem>>, vector<16x128xf32>,
    %c2_i32 = arith.constant 2 : i32
    %9 = arith.cmpi eq, %arg0, %c2_i32 : i32
    %10 = arith.extui %9 : i1 to i32
    %c0_i32_7 = arith.constant 0 : i32
    %11 = arith.cmpi ne, %10, %c0_i32_7 : i32
    scf.if %11 {
      %c0_8 = arith.constant 0 : index
      %12 = memref.load %arg1[%c0_8] : memref<1xi32, #tpu.memory_space<smem>>
      %c16_i32 = arith.constant 16 : i32
      %c0_i32_9 = arith.constant 0 : i32
      %13 = arith.cmpi eq, %c16_i32, %c0_i32_9 : i32
      %c1_i32 = arith.constant 1 : i32
      %14 = arith.select %13, %c1_i32, %c16_i32 : i32
      %15 = arith.remsi %12, %14 : i32
      %c0_i32_10 = arith.constant 0 : i32
      %16 = arith.cmpi ne, %15, %c0_i32_10 : i32
      %c0_i32_11 = arith.constant 0 : i32
      %17 = arith.cmpi slt, %15, %c0_i32_11 : i32
      %c0_i32_12 = arith.constant 0 : i32
      %18 = arith.cmpi slt, %14, %c0_i32_12 : i32
      %19 = arith.xori %17, %18 : i1
      %20 = arith.andi %19, %16 : i1
      %21 = arith.addi %15, %14 : i32
      %22 = arith.select %20, %21, %15 : i32
      %c0_i32_13 = arith.constant 0 : i32
      %23 = arith.cmpi eq, %22, %c0_i32_13 : i32
      %true = arith.constant true
      %24 = arith.xori %23, %true : i1
      %false = arith.constant false
      %25 = arith.ori %false, %24 : i1
      %false_14 = arith.constant false
      %c1_i32_15 = arith.constant 1 : i32
      %c-1_i32 = arith.constant -1 : i32
      %26 = arith.select %false_14, %c-1_i32, %c1_i32_15 : i32
      %c0_16 = arith.constant 0 : index
      %27 = memref.load %arg1[%c0_16] : memref<1xi32, #tpu.memory_space<smem>>
      %28 = tpu.assume_multiple %27, 16 : i32
      %c0_i32_17 = arith.constant 0 : i32
      %c0_i32_18 = arith.constant 0 : i32
      %29 = tpu.memref_slice %arg21[%28, %c0_i32_18] : memref<384x128xbf16, #tpu.memory_space<any>> -> memref<16x128xbf16, #tpu.memory_space<any>>
      %30 = tpu.memref_slice %arg24[%c0_i32_17] : memref<1x!tpu.dma_semaphore, #tpu.memory_space<semaphore_mem>> -> memref<1x!tpu.dma_semaphore, #tpu.memory_space<semaphore_mem>>
      %31 = tpu.memref_squeeze %30 : memref<1x!tpu.dma_semaphore, #tpu.memory_space<semaphore_mem>> -> memref<!tpu.dma_semaphore, #tpu.memory_space<semaphore_mem>>
      tpu.enqueue_dma source(%arg23 : memref<16x128xbf16, #tpu.memory_space<vmem>>) target(%29 : memref<16x128xbf16, #tpu.memory_space<any>>) target_semaphore(%31 : memref<!tpu.dma_semaphore, #tpu.memory_space<semaphore_mem>>)
      %c0_i32_19 = arith.constant 0 : i32
      %c0_i32_20 = arith.constant 0 : i32
      %32 = tpu.memref_slice %arg21[%28, %c0_i32_20] : memref<384x128xbf16, #tpu.memory_space<any>> -> memref<16x128xbf16, #tpu.memory_space<any>>
      %33 = tpu.memref_slice %arg24[%c0_i32_19] : memref<1x!tpu.dma_semaphore, #tpu.memory_space<semaphore_mem>> -> memref<1x!tpu.dma_semaphore, #tpu.memory_space<semaphore_mem>>
      %34 = tpu.memref_squeeze %33 : memref<1x!tpu.dma_semaphore, #tpu.memory_space<semaphore_mem>> -> memref<!tpu.dma_semaphore, #tpu.memory_space<semaphore_mem>>
      tpu.wait_dma2 semaphore(%34 : memref<!tpu.dma_semaphore, #tpu.memory_space<semaphore_mem>>) src(%arg23 : memref<16x128xbf16, #tpu.memory_space<vmem>>) dst(%32 : memref<16x128xbf16, #tpu.memory_space<any>>)
    } else {
    }
    return
  }
  func.func @transform_0(%arg0: i32) -> i32 {
    %c0_i32 = arith.constant 0 : i32
    %c0_i32_0 = arith.constant 0 : i32
    return %c0_i32 : i32
  }
  func.func @transform_1(%arg0: i32) -> (i32, i32) {
    %c0_i32 = arith.constant 0 : i32
    %c0_i32_0 = arith.constant 0 : i32
    %c0_i32_1 = arith.constant 0 : i32
    return %c0_i32, %c0_i32_0 : i32, i32
  }
  func.func @transform_2(%arg0: i32) -> (i32, i32) {
    %c0_i32 = arith.constant 0 : i32
    %c0_i32_0 = arith.constant 0 : i32
    %c0_i32_1 = arith.constant 0 : i32
    return %c0_i32, %c0_i32_0 : i32, i32
  }
  func.func @transform_3(%arg0: i32) -> (i32, i32) {
    %c0_i32 = arith.constant 0 : i32
    %c0_i32_0 = arith.constant 0 : i32
    %c0_i32_1 = arith.constant 0 : i32
    return %c0_i32, %c0_i32_0 : i32, i32
  }
  func.func @transform_4(%arg0: i32) -> (i32, i32) {
    %c0_i32 = arith.constant 0 : i32
    %c0_i32_0 = arith.constant 0 : i32
    %c0_i32_1 = arith.constant 0 : i32
    return %c0_i32, %c0_i32_0 : i32, i32
  }
  func.func @transform_5(%arg0: i32) -> (i32, i32) {
    %c0_i32 = arith.constant 0 : i32
    %c0_i32_0 = arith.constant 0 : i32
    %c0_i32_1 = arith.constant 0 : i32
    return %c0_i32, %c0_i32_0 : i32, i32
  }
  func.func @transform_6(%arg0: i32) -> (i32, i32) {
    %c0_i32 = arith.constant 0 : i32
    %c0_i32_0 = arith.constant 0 : i32
    %c0_i32_1 = arith.constant 0 : i32
    return %c0_i32, %c0_i32_0 : i32, i32
  }
  func.func @transform_7(%arg0: i32) -> (i32, i32) {
    %c0_i32 = arith.constant 0 : i32
    %c0_i32_0 = arith.constant 0 : i32
    %c0_i32_1 = arith.constant 0 : i32
    return %c0_i32, %c0_i32_0 : i32, i32
  }
  func.func @transform_8(%arg0: i32) -> (i32, i32) {
    %c0_i32 = arith.constant 0 : i32
    %c0_i32_0 = arith.constant 0 : i32
    %c0_i32_1 = arith.constant 0 : i32
    return %c0_i32, %c0_i32_0 : i32, i32
  }
  func.func @transform_9(%arg0: i32) -> (i32, i32) {
    %c0_i32 = arith.constant 0 : i32
    %c0_i32_0 = arith.constant 0 : i32
    %c0_i32_1 = arith.constant 0 : i32
    return %c0_i32, %c0_i32_0 : i32, i32
  }
  func.func @transform_10(%arg0: i32) -> (i32, i32) {
    %c0_i32 = arith.constant 0 : i32
    %c0_i32_0 = arith.constant 0 : i32
    %c0_i32_1 = arith.constant 0 : i32
    return %c0_i32, %c0_i32_0 : i32, i32
  }
  func.func @transform_11(%arg0: i32) -> (i32, i32) {
    %c0_i32 = arith.constant 0 : i32
    %c0_i32_0 = arith.constant 0 : i32
    return %arg0, %c0_i32 : i32, i32
  }
  func.func @transform_12(%arg0: i32) -> (i32, i32) {
    %c0_i32 = arith.constant 0 : i32
    %c0_i32_0 = arith.constant 0 : i32
    %c0_i32_1 = arith.constant 0 : i32
    return %c0_i32, %c0_i32_0 : i32, i32
  }
  func.func @transform_13(%arg0: i32) -> (i32, i32) {
    %c0_i32 = arith.constant 0 : i32
    %c0_i32_0 = arith.constant 0 : i32
    %c0_i32_1 = arith.constant 0 : i32
    return %c0_i32, %c0_i32_0 : i32, i32
  }
  func.func @transform_14(%arg0: i32) -> (i32, i32) {
    %c0_i32 = arith.constant 0 : i32
    %c0_i32_0 = arith.constant 0 : i32
    %c0_i32_1 = arith.constant 0 : i32
    return %c0_i32, %c0_i32_0 : i32, i32
  }
  func.func @transform_15(%arg0: i32) -> (i32, i32) {
    %c0_i32 = arith.constant 0 : i32
    %c0_i32_0 = arith.constant 0 : i32
    return %c0_i32, %arg0 : i32, i32
  }
  func.func @transform_16(%arg0: i32) -> (i32, i32) {
    %c0_i32 = arith.constant 0 : i32
    %c0_i32_0 = arith.constant 0 : i32
    %c0_i32_1 = arith.constant 0 : i32
    return %c0_i32, %c0_i32_0 : i32, i32
  }
  func.func @transform_17(%arg0: i32) -> (i32, i32) {
    %c0_i32 = arith.constant 0 : i32
    %c0_i32_0 = arith.constant 0 : i32
    %c0_i32_1 = arith.constant 0 : i32
    return %c0_i32, %c0_i32_0 : i32, i32
  }
  func.func @transform_18(%arg0: i32) -> (i32, i32) {
    %c0_i32 = arith.constant 0 : i32
    %c0_i32_0 = arith.constant 0 : i32
    %c0_i32_1 = arith.constant 0 : i32
    return %c0_i32, %c0_i32_0 : i32, i32
  }
  func.func @transform_19(%arg0: i32) -> (i32, i32) {
    %c0_i32 = arith.constant 0 : i32
    %c0_i32_0 = arith.constant 0 : i32
    %c0_i32_1 = arith.constant 0 : i32
    return %c0_i32, %c0_i32_0 : i32, i32
  }
}

</mosaic_0001>

<llo_original>
// kernel: moco_forward.1
$region0: #{moco_forward.1}
  #allocation0 [shape = 'u32[]', space=smem, size = 0x4, offset = 0x4, fixed_abs, tag = 'smem constant byte address 0x4 - core index']
  #allocation1 [shape = 'u32[72,128]{1,0:T(1,128)}', space=vmem, size = 0x9000, scoped, tag = 'internal scratch']
  #allocation2 [shape = 'bf16[16,128]{1,0:T(8,128)(2,1)}', space=vmem, size = 0x1000, scoped, tag = 'scratch operand']
  #allocation3 [shape = 'bf16[16,128]{1,0:T(8,128)(2,1)}', space=vmem, size = 0x1000, scoped, tag = 'scratch operand']
  #allocation4 [shape = 's32[1]{0}', space=sflag, size = 0x4, scoped, tag = 'scratch operand']
  #allocation5 [shape = 's32[1]{0:T(128)S(6)}', space=smem, size = 0x200, scoped, tag = 'scoped memory for moco_forward.1']
  #allocation17 [shape = 's32[]', space=sflag, size = 0x4, offset = 0, fixed_abs, tag = 'sflag constant byte address 0x0 - dummy sync flag']
  %s0 = inlined_call_operand.<no memory space> [shape: s32[1], index: 0, kind: input, shape index: {}]
  %s1 = inlined_call_operand.vmem [shape: f32[16,768], index: 1, kind: input, shape index: {}]
  %s2 = inlined_call_operand.vmem [shape: f32[16,768], index: 2, kind: input, shape index: {}]
  %s3 = inlined_call_operand.hbm [shape: f32[768,128], index: 3, kind: input, shape index: {}]
  %s4 = inlined_call_operand.vmem [shape: f32[1,128], index: 4, kind: input, shape index: {}]
  %s5 = inlined_call_operand.hbm [shape: f32[128,128], index: 5, kind: input, shape index: {}]
  %s6 = inlined_call_operand.vmem [shape: f32[1,128], index: 6, kind: input, shape index: {}]
  %s7 = inlined_call_operand.vmem [shape: f32[768,128], index: 7, kind: input, shape index: {}, may-alias: {7,16}]
  %s8 = inlined_call_operand.vmem [shape: f32[1,128], index: 8, kind: input, shape index: {}, may-alias: {8,17}]
  %s9 = inlined_call_operand.hbm [shape: f32[128,128], index: 9, kind: input, shape index: {}, may-alias: {9,18}]
  %s10 = inlined_call_operand.vmem [shape: f32[1,128], index: 10, kind: input, shape index: {}, may-alias: {10,19}]
  %s11 = inlined_call_operand.vmem [shape: bf16[384,128], index: 11, kind: input, shape index: {}, may-alias: {11,20}]
  %s12 = inlined_call_operand.hbm [shape: f32[16,128], index: 12, kind: output, shape index: {0}]
  %s13 = inlined_call_operand.hbm [shape: f32[16,128], index: 13, kind: output, shape index: {1}]
  %s14 = inlined_call_operand.vmem [shape: f32[16,1], index: 14, kind: output, shape index: {2}]
  %s15 = inlined_call_operand.vmem [shape: f32[16,384], index: 15, kind: output, shape index: {3}]
  %s16 = inlined_call_operand.vmem [shape: f32[768,128], index: 16, kind: output, shape index: {4}, may-alias: {7,16}]
  %s17 = inlined_call_operand.vmem [shape: f32[1,128], index: 17, kind: output, shape index: {5}, may-alias: {8,17}]
  %s18 = inlined_call_operand.hbm [shape: f32[128,128], index: 18, kind: output, shape index: {6}, may-alias: {9,18}]
  %s19 = inlined_call_operand.vmem [shape: f32[1,128], index: 19, kind: output, shape index: {7}, may-alias: {10,19}]
  %s20 = inlined_call_operand.vmem [shape: bf16[384,128], index: 20, kind: output, shape index: {8}, may-alias: {11,20}]
  %21 = xla_tuple %s12, %s13, %s14, %s15, %s16, %s17, %s18, %s19, %s20
  %s22 = sld [smem:[#allocation0]]
  $region225: #{moco_forward.1} parent=0
    _
  %s24 = ssub.s32 1, %s22
  %s25 = scalar_select 0, %s24, %s22
  %26 = sst [smem:[#allocation5]] %s0
  $region1: #{moco_forward.1} parent=0
    #allocation6 [shape = 'u8[393216]{0}', space=vmem, size = 0x60000, scoped, tag = 'input window, operand 3, single buffered']
    #allocation7 [shape = 's32[2]{0}', space=sflag, size = 0x8, scoped, tag = 'scoped memory for moco_forward.1']
    #allocation8 [shape = 's32[2]{0}', space=sflag, size = 0x8, scoped, tag = 'scoped memory for moco_forward.1']
    #allocation9 [shape = 'u8[65536]{0}', space=vmem, size = 0x10000, scoped, tag = 'input window, operand 5, single buffered']
    #allocation10 [shape = 's32[1]{0}', space=sflag, size = 0x4, scoped, tag = 'scoped memory for moco_forward.1']
    #allocation11 [shape = 'u8[65536]{0}', space=vmem, size = 0x10000, scoped, tag = 'input window, operand 9, single buffered']
    #allocation12 [shape = 'u8[8192]{0}', space=vmem, size = 0x2000, scoped, tag = 'output window, operand 0, single buffered']
    #allocation13 [shape = 'u8[8192]{0}', space=vmem, size = 0x2000, scoped, tag = 'output window, operand 1, single buffered']
    #allocation14 [shape = 's32[1]{0}', space=sflag, size = 0x4, scoped, tag = 'scoped memory for moco_forward.1']
    #allocation15 [shape = 'u8[16384]{0}', space=vmem, size = 0x4000, scoped, tag = 'output window, operand 3']
    #allocation16 [shape = 'u8[65536]{0}', space=vmem, size = 0x10000, scoped, tag = 'output window, operand 6, single buffered']
    %27 = vsyncpa [#allocation7], 0
    %28 = vsyncpa [#allocation10], 0
    %29 = vsyncpa [#allocation8], 0
    %30 = vsyncpa [#allocation14], 0
    loop: start=0, step=1, limit=5
    $region2: #{moco_forward.1} parent=1 // loop_pre_header
      _
    $region3: #{moco_forward.1} parent=1 // loop_header
      %s32 = sphi 0, %s36
      %p33 = scmp.ge.s32.totalorder %s32, 5
      %s40 = sphi 0, %s40
      %s42 = sphi 0, %s40
      %s43 = sphi 0, %s42
      %s57 = sphi 0, %s43
      %s61 = sphi 0, %s61
      %s63 = sphi 0, %s61
      %s64 = sphi 0, %s63
      %s78 = sphi 0, %s64
      %s82 = sphi 0, %s82
      %s84 = sphi 0, %s82
      %s85 = sphi 0, %s84
      %s99 = sphi 0, %s85
      %s103 = sphi 0, %s103
      %s105 = sphi 0, %s103
      %s106 = sphi 0, %s105
      %s120 = sphi 0, %s106
      %s124 = sphi 0, %s124
      %s126 = sphi 0, %s124
      %s127 = sphi 0, %s126
      %s141 = sphi 0, %s127
      %s145 = sphi 0, %s145
      %s147 = sphi 0, %s145
      %s148 = sphi 0, %s147
      %s162 = sphi 0, %s148
      %s166 = sphi 0, %s166
      %s168 = sphi 0, %s166
      %s169 = sphi 0, %s168
      %s183 = sphi 0, %s169
      %s187 = sphi 0, %s187
      %s189 = sphi 0, %s187
      %s190 = sphi 0, %s189
      %s204 = sphi 0, %s190
      %s208 = sphi 0, %s208
      %s210 = sphi 0, %s208
      %s211 = sphi 0, %s210
      %s225 = sphi 0, %s211
      %s229 = sphi 0, %s229
      %s231 = sphi 0, %s229
      %s232 = sphi 0, %s231
      %s246 = sphi 0, %s232
      %s250 = sphi 0, %s250
      %s252 = sphi 0, %s250
      %s253 = sphi 0, %s252
      %s267 = sphi 0, %s253
      %s273 = sphi 0, %s275
      %s276 = sphi 0, %s273
      %s277 = sphi 0, %s276
      %s293 = sphi 0, %s277
      %s297 = sphi 0, %s297
      %s299 = sphi 0, %s297
      %s300 = sphi 0, %s299
      %s314 = sphi 0, %s300
      %s318 = sphi 0, %s318
      %s320 = sphi 0, %s318
      %s321 = sphi 0, %s320
      %s335 = sphi 0, %s321
      %s339 = sphi 0, %s339
      %s341 = sphi 0, %s339
      %s342 = sphi 0, %s341
      %s356 = sphi 0, %s342
      %s362 = sphi 0, %s364
      %s365 = sphi 0, %s362
      %s366 = sphi 0, %s365
      %s382 = sphi 0, %s366
      %s386 = sphi 0, %s386
      %s388 = sphi 0, %s386
      %s389 = sphi 0, %s388
      %s403 = sphi 0, %s389
      %s407 = sphi 0, %s407
      %s409 = sphi 0, %s407
      %s410 = sphi 0, %s409
      %s424 = sphi 0, %s410
      %s428 = sphi 0, %s428
      %s430 = sphi 0, %s428
      %s431 = sphi 0, %s430
      %s445 = sphi 0, %s431
      %s449 = sphi 0, %s449
      %s451 = sphi 0, %s449
      %s452 = sphi 0, %s451
      %s466 = sphi 0, %s452
    $region4: #{moco_forward.1} parent=1 // loop_header_branch
      %35 = sbr.rel (%p33) target = $region8
    $region5: #{moco_forward.1} parent=1 // loop_body
      %s37 = ssub.s32 %s32, 1
      %s38 = ssub.s32 %s32, 2
      %s39 = sadd.s32 %s32, 1
      %s41 = sadd.s32 %s40, 1
      %p44 = scmp.eq.s32.totalorder %s32, 2
      %p45 = scmp.ne.s32.totalorder %s40, %s42
      %p46 = scmp.eq.s32.totalorder %s32, 0
      %p47 = por %p45, %p46
      %p48 = scmp.ne.s32.totalorder %s40, %s42
      %p49 = scmp.eq.s32.totalorder %s37, 2
      %p50 = por %p48, %p49
      %p51 = scmp.ne.s32.totalorder %s42, %s43
      %p52 = scmp.eq.s32.totalorder %s37, 0
      %p53 = por %p51, %p52
      %p54 = scmp.ne.s32.totalorder %s42, %s43
      %p55 = scmp.eq.s32.totalorder %s38, 2
      %p56 = por %p54, %p55
      %p58 = scmp.ne.s32.totalorder %s43, %s57
      %p59 = scmp.eq.s32.totalorder %s38, 0
      %p60 = por %p58, %p59
      %s62 = sadd.s32 %s61, 1
      %p65 = scmp.eq.s32.totalorder %s32, 2
      %p66 = scmp.ne.s32.totalorder %s61, %s63
      %p67 = scmp.eq.s32.totalorder %s32, 0
      %p68 = por %p66, %p67
      %p69 = scmp.ne.s32.totalorder %s61, %s63
      %p70 = scmp.eq.s32.totalorder %s37, 2
      %p71 = por %p69, %p70
      %p72 = scmp.ne.s32.totalorder %s63, %s64
      %p73 = scmp.eq.s32.totalorder %s37, 0
      %p74 = por %p72, %p73
      %p75 = scmp.ne.s32.totalorder %s63, %s64
      %p76 = scmp.eq.s32.totalorder %s38, 2
      %p77 = por %p75, %p76
      %p79 = scmp.ne.s32.totalorder %s64, %s78
      %p80 = scmp.eq.s32.totalorder %s38, 0
      %p81 = por %p79, %p80
      %s83 = sadd.s32 %s82, 1
      %p86 = scmp.eq.s32.totalorder %s32, 2
      %p87 = scmp.ne.s32.totalorder %s82, %s84
      %p88 = scmp.eq.s32.totalorder %s32, 0
      %p89 = por %p87, %p88
      %p90 = scmp.ne.s32.totalorder %s82, %s84
      %p91 = scmp.eq.s32.totalorder %s37, 2
      %p92 = por %p90, %p91
      %p93 = scmp.ne.s32.totalorder %s84, %s85
      %p94 = scmp.eq.s32.totalorder %s37, 0
      %p95 = por %p93, %p94
      %p96 = scmp.ne.s32.totalorder %s84, %s85
      %p97 = scmp.eq.s32.totalorder %s38, 2
      %p98 = por %p96, %p97
      %p100 = scmp.ne.s32.totalorder %s85, %s99
      %p101 = scmp.eq.s32.totalorder %s38, 0
      %p102 = por %p100, %p101
      %s104 = sadd.s32 %s103, 1
      %p107 = scmp.eq.s32.totalorder %s32, 2
      %p108 = scmp.ne.s32.totalorder %s103, %s105
      %p109 = scmp.eq.s32.totalorder %s32, 0
      %p110 = por %p108, %p109
      %p111 = scmp.ne.s32.totalorder %s103, %s105
      %p112 = scmp.eq.s32.totalorder %s37, 2
      %p113 = por %p111, %p112
      %p114 = scmp.ne.s32.totalorder %s105, %s106
      %p115 = scmp.eq.s32.totalorder %s37, 0
      %p116 = por %p114, %p115
      %p117 = scmp.ne.s32.totalorder %s105, %s106
      %p118 = scmp.eq.s32.totalorder %s38, 2
      %p119 = por %p117, %p118
      %p121 = scmp.ne.s32.totalorder %s106, %s120
      %p122 = scmp.eq.s32.totalorder %s38, 0
      %p123 = por %p121, %p122
      %s125 = sadd.s32 %s124, 1
      %p128 = scmp.eq.s32.totalorder %s32, 2
      %p129 = scmp.ne.s32.totalorder %s124, %s126
      %p130 = scmp.eq.s32.totalorder %s32, 0
      %p131 = por %p129, %p130
      %p132 = scmp.ne.s32.totalorder %s124, %s126
      %p133 = scmp.eq.s32.totalorder %s37, 2
      %p134 = por %p132, %p133
      %p135 = scmp.ne.s32.totalorder %s126, %s127
      %p136 = scmp.eq.s32.totalorder %s37, 0
      %p137 = por %p135, %p136
      %p138 = scmp.ne.s32.totalorder %s126, %s127
      %p139 = scmp.eq.s32.totalorder %s38, 2
      %p140 = por %p138, %p139
      %p142 = scmp.ne.s32.totalorder %s127, %s141
      %p143 = scmp.eq.s32.totalorder %s38, 0
      %p144 = por %p142, %p143
      %s146 = sadd.s32 %s145, 1
      %p149 = scmp.eq.s32.totalorder %s32, 2
      %p150 = scmp.ne.s32.totalorder %s145, %s147
      %p151 = scmp.eq.s32.totalorder %s32, 0
      %p152 = por %p150, %p151
      %p153 = scmp.ne.s32.totalorder %s145, %s147
      %p154 = scmp.eq.s32.totalorder %s37, 2
      %p155 = por %p153, %p154
      %p156 = scmp.ne.s32.totalorder %s147, %s148
      %p157 = scmp.eq.s32.totalorder %s37, 0
      %p158 = por %p156, %p157
      %p159 = scmp.ne.s32.totalorder %s147, %s148
      %p160 = scmp.eq.s32.totalorder %s38, 2
      %p161 = por %p159, %p160
      %p163 = scmp.ne.s32.totalorder %s148, %s162
      %p164 = scmp.eq.s32.totalorder %s38, 0
      %p165 = por %p163, %p164
      %s167 = sadd.s32 %s166, 1
      %p170 = scmp.eq.s32.totalorder %s32, 2
      %p171 = scmp.ne.s32.totalorder %s166, %s168
      %p172 = scmp.eq.s32.totalorder %s32, 0
      %p173 = por %p171, %p172
      %p174 = scmp.ne.s32.totalorder %s166, %s168
      %p175 = scmp.eq.s32.totalorder %s37, 2
      %p176 = por %p174, %p175
      %p177 = scmp.ne.s32.totalorder %s168, %s169
      %p178 = scmp.eq.s32.totalorder %s37, 0
      %p179 = por %p177, %p178
      %p180 = scmp.ne.s32.totalorder %s168, %s169
      %p181 = scmp.eq.s32.totalorder %s38, 2
      %p182 = por %p180, %p181
      %p184 = scmp.ne.s32.totalorder %s169, %s183
      %p185 = scmp.eq.s32.totalorder %s38, 0
      %p186 = por %p184, %p185
      %s188 = sadd.s32 %s187, 1
      %p191 = scmp.eq.s32.totalorder %s32, 2
      %p192 = scmp.ne.s32.totalorder %s187, %s189
      %p193 = scmp.eq.s32.totalorder %s32, 0
      %p194 = por %p192, %p193
      %p195 = scmp.ne.s32.totalorder %s187, %s189
      %p196 = scmp.eq.s32.totalorder %s37, 2
      %p197 = por %p195, %p196
      %p198 = scmp.ne.s32.totalorder %s189, %s190
      %p199 = scmp.eq.s32.totalorder %s37, 0
      %p200 = por %p198, %p199
      %p201 = scmp.ne.s32.totalorder %s189, %s190
      %p202 = scmp.eq.s32.totalorder %s38, 2
      %p203 = por %p201, %p202
      %p205 = scmp.ne.s32.totalorder %s190, %s204
      %p206 = scmp.eq.s32.totalorder %s38, 0
      %p207 = por %p205, %p206
      %s209 = sadd.s32 %s208, 1
      %p212 = scmp.eq.s32.totalorder %s32, 2
      %p213 = scmp.ne.s32.totalorder %s208, %s210
      %p214 = scmp.eq.s32.totalorder %s32, 0
      %p215 = por %p213, %p214
      %p216 = scmp.ne.s32.totalorder %s208, %s210
      %p217 = scmp.eq.s32.totalorder %s37, 2
      %p218 = por %p216, %p217
      %p219 = scmp.ne.s32.totalorder %s210, %s211
      %p220 = scmp.eq.s32.totalorder %s37, 0
      %p221 = por %p219, %p220
      %p222 = scmp.ne.s32.totalorder %s210, %s211
      %p223 = scmp.eq.s32.totalorder %s38, 2
      %p224 = por %p222, %p223
      %p226 = scmp.ne.s32.totalorder %s211, %s225
      %p227 = scmp.eq.s32.totalorder %s38, 0
      %p228 = por %p226, %p227
      %s230 = sadd.s32 %s229, 1
      %p233 = scmp.eq.s32.totalorder %s32, 2
      %p234 = scmp.ne.s32.totalorder %s229, %s231
      %p235 = scmp.eq.s32.totalorder %s32, 0
      %p236 = por %p234, %p235
      %p237 = scmp.ne.s32.totalorder %s229, %s231
      %p238 = scmp.eq.s32.totalorder %s37, 2
      %p239 = por %p237, %p238
      %p240 = scmp.ne.s32.totalorder %s231, %s232
      %p241 = scmp.eq.s32.totalorder %s37, 0
      %p242 = por %p240, %p241
      %p243 = scmp.ne.s32.totalorder %s231, %s232
      %p244 = scmp.eq.s32.totalorder %s38, 2
      %p245 = por %p243, %p244
      %p247 = scmp.ne.s32.totalorder %s232, %s246
      %p248 = scmp.eq.s32.totalorder %s38, 0
      %p249 = por %p247, %p248
      %s251 = sadd.s32 %s250, 1
      %p254 = scmp.eq.s32.totalorder %s32, 2
      %p255 = scmp.ne.s32.totalorder %s250, %s252
      %p256 = scmp.eq.s32.totalorder %s32, 0
      %p257 = por %p255, %p256
      %p258 = scmp.ne.s32.totalorder %s250, %s252
      %p259 = scmp.eq.s32.totalorder %s37, 2
      %p260 = por %p258, %p259
      %p261 = scmp.ne.s32.totalorder %s252, %s253
      %p262 = scmp.eq.s32.totalorder %s37, 0
      %p263 = por %p261, %p262
      %p264 = scmp.ne.s32.totalorder %s252, %s253
      %p265 = scmp.eq.s32.totalorder %s38, 2
      %p266 = por %p264, %p265
      %p268 = scmp.ne.s32.totalorder %s253, %s267
      %p269 = scmp.eq.s32.totalorder %s38, 0
      %p270 = por %p268, %p269
      %s271 = ssub.s32 %s32, %s39
      %p272 = scmp.eq.s32.totalorder %s271, 0
      %s274 = sadd.s32 %s273, 1
      %s275 = scalar_select %p272, %s273, %s274
      %p278 = pneg %p272
      %p279 = scmp.eq.s32.totalorder %s32, 2
      %p280 = por %p278, %p279
      %p281 = scmp.ne.s32.totalorder %s273, %s276
      %p282 = scmp.eq.s32.totalorder %s32, 0
      %p283 = por %p281, %p282
      %p284 = scmp.ne.s32.totalorder %s273, %s276
      %p285 = scmp.eq.s32.totalorder %s37, 2
      %p286 = por %p284, %p285
      %p287 = scmp.ne.s32.totalorder %s276, %s277
      %p288 = scmp.eq.s32.totalorder %s37, 0
      %p289 = por %p287, %p288
      %p290 = scmp.ne.s32.totalorder %s276, %s277
      %p291 = scmp.eq.s32.totalorder %s38, 2
      %p292 = por %p290, %p291
      %p294 = scmp.ne.s32.totalorder %s277, %s293
      %p295 = scmp.eq.s32.totalorder %s38, 0
      %p296 = por %p294, %p295
      %s298 = sadd.s32 %s297, 1
      %p301 = scmp.eq.s32.totalorder %s32, 2
      %p302 = scmp.ne.s32.totalorder %s297, %s299
      %p303 = scmp.eq.s32.totalorder %s32, 0
      %p304 = por %p302, %p303
      %p305 = scmp.ne.s32.totalorder %s297, %s299
      %p306 = scmp.eq.s32.totalorder %s37, 2
      %p307 = por %p305, %p306
      %p308 = scmp.ne.s32.totalorder %s299, %s300
      %p309 = scmp.eq.s32.totalorder %s37, 0
      %p310 = por %p308, %p309
      %p311 = scmp.ne.s32.totalorder %s299, %s300
      %p312 = scmp.eq.s32.totalorder %s38, 2
      %p313 = por %p311, %p312
      %p315 = scmp.ne.s32.totalorder %s300, %s314
      %p316 = scmp.eq.s32.totalorder %s38, 0
      %p317 = por %p315, %p316
      %s319 = sadd.s32 %s318, 1
      %p322 = scmp.eq.s32.totalorder %s32, 2
      %p323 = scmp.ne.s32.totalorder %s318, %s320
      %p324 = scmp.eq.s32.totalorder %s32, 0
      %p325 = por %p323, %p324
      %p326 = scmp.ne.s32.totalorder %s318, %s320
      %p327 = scmp.eq.s32.totalorder %s37, 2
      %p328 = por %p326, %p327
      %p329 = scmp.ne.s32.totalorder %s320, %s321
      %p330 = scmp.eq.s32.totalorder %s37, 0
      %p331 = por %p329, %p330
      %p332 = scmp.ne.s32.totalorder %s320, %s321
      %p333 = scmp.eq.s32.totalorder %s38, 2
      %p334 = por %p332, %p333
      %p336 = scmp.ne.s32.totalorder %s321, %s335
      %p337 = scmp.eq.s32.totalorder %s38, 0
      %p338 = por %p336, %p337
      %s340 = sadd.s32 %s339, 1
      %p343 = scmp.eq.s32.totalorder %s32, 2
      %p344 = scmp.ne.s32.totalorder %s339, %s341
      %p345 = scmp.eq.s32.totalorder %s32, 0
      %p346 = por %p344, %p345
      %p347 = scmp.ne.s32.totalorder %s339, %s341
      %p348 = scmp.eq.s32.totalorder %s37, 2
      %p349 = por %p347, %p348
      %p350 = scmp.ne.s32.totalorder %s341, %s342
      %p351 = scmp.eq.s32.totalorder %s37, 0
      %p352 = por %p350, %p351
      %p353 = scmp.ne.s32.totalorder %s341, %s342
      %p354 = scmp.eq.s32.totalorder %s38, 2
      %p355 = por %p353, %p354
      %p357 = scmp.ne.s32.totalorder %s342, %s356
      %p358 = scmp.eq.s32.totalorder %s38, 0
      %p359 = por %p357, %p358
      %s360 = ssub.s32 %s32, %s39
      %p361 = scmp.eq.s32.totalorder %s360, 0
      %s363 = sadd.s32 %s362, 1
      %s364 = scalar_select %p361, %s362, %s363
      %p367 = pneg %p361
      %p368 = scmp.eq.s32.totalorder %s32, 2
      %p369 = por %p367, %p368
      %p370 = scmp.ne.s32.totalorder %s362, %s365
      %p371 = scmp.eq.s32.totalorder %s32, 0
      %p372 = por %p370, %p371
      %p373 = scmp.ne.s32.totalorder %s362, %s365
      %p374 = scmp.eq.s32.totalorder %s37, 2
      %p375 = por %p373, %p374
      %p376 = scmp.ne.s32.totalorder %s365, %s366
      %p377 = scmp.eq.s32.totalorder %s37, 0
      %p378 = por %p376, %p377
      %p379 = scmp.ne.s32.totalorder %s365, %s366
      %p380 = scmp.eq.s32.totalorder %s38, 2
      %p381 = por %p379, %p380
      %p383 = scmp.ne.s32.totalorder %s366, %s382
      %p384 = scmp.eq.s32.totalorder %s38, 0
      %p385 = por %p383, %p384
      %s387 = sadd.s32 %s386, 1
      %p390 = scmp.eq.s32.totalorder %s32, 2
      %p391 = scmp.ne.s32.totalorder %s386, %s388
      %p392 = scmp.eq.s32.totalorder %s32, 0
      %p393 = por %p391, %p392
      %p394 = scmp.ne.s32.totalorder %s386, %s388
      %p395 = scmp.eq.s32.totalorder %s37, 2
      %p396 = por %p394, %p395
      %p397 = scmp.ne.s32.totalorder %s388, %s389
      %p398 = scmp.eq.s32.totalorder %s37, 0
      %p399 = por %p397, %p398
      %p400 = scmp.ne.s32.totalorder %s388, %s389
      %p401 = scmp.eq.s32.totalorder %s38, 2
      %p402 = por %p400, %p401
      %p404 = scmp.ne.s32.totalorder %s389, %s403
      %p405 = scmp.eq.s32.totalorder %s38, 0
      %p406 = por %p404, %p405
      %s408 = sadd.s32 %s407, 1
      %p411 = scmp.eq.s32.totalorder %s32, 2
      %p412 = scmp.ne.s32.totalorder %s407, %s409
      %p413 = scmp.eq.s32.totalorder %s32, 0
      %p414 = por %p412, %p413
      %p415 = scmp.ne.s32.totalorder %s407, %s409
      %p416 = scmp.eq.s32.totalorder %s37, 2
      %p417 = por %p415, %p416
      %p418 = scmp.ne.s32.totalorder %s409, %s410
      %p419 = scmp.eq.s32.totalorder %s37, 0
      %p420 = por %p418, %p419
      %p421 = scmp.ne.s32.totalorder %s409, %s410
      %p422 = scmp.eq.s32.totalorder %s38, 2
      %p423 = por %p421, %p422
      %p425 = scmp.ne.s32.totalorder %s410, %s424
      %p426 = scmp.eq.s32.totalorder %s38, 0
      %p427 = por %p425, %p426
      %s429 = sadd.s32 %s428, 1
      %p432 = scmp.eq.s32.totalorder %s32, 2
      %p433 = scmp.ne.s32.totalorder %s428, %s430
      %p434 = scmp.eq.s32.totalorder %s32, 0
      %p435 = por %p433, %p434
      %p436 = scmp.ne.s32.totalorder %s428, %s430
      %p437 = scmp.eq.s32.totalorder %s37, 2
      %p438 = por %p436, %p437
      %p439 = scmp.ne.s32.totalorder %s430, %s431
      %p440 = scmp.eq.s32.totalorder %s37, 0
      %p441 = por %p439, %p440
      %p442 = scmp.ne.s32.totalorder %s430, %s431
      %p443 = scmp.eq.s32.totalorder %s38, 2
      %p444 = por %p442, %p443
      %p446 = scmp.ne.s32.totalorder %s431, %s445
      %p447 = scmp.eq.s32.totalorder %s38, 0
      %p448 = por %p446, %p447
      %s450 = sadd.s32 %s449, 1
      %p453 = scmp.eq.s32.totalorder %s32, 2
      %p454 = scmp.ne.s32.totalorder %s449, %s451
      %p455 = scmp.eq.s32.totalorder %s32, 0
      %p456 = por %p454, %p455
      %p457 = scmp.ne.s32.totalorder %s449, %s451
      %p458 = scmp.eq.s32.totalorder %s37, 2
      %p459 = por %p457, %p458
      %p460 = scmp.ne.s32.totalorder %s451, %s452
      %p461 = scmp.eq.s32.totalorder %s37, 0
      %p462 = por %p460, %p461
      %p463 = scmp.ne.s32.totalorder %s451, %s452
      %p464 = scmp.eq.s32.totalorder %s38, 2
      %p465 = por %p463, %p464
      %p467 = scmp.ne.s32.totalorder %s452, %s466
      %p468 = scmp.eq.s32.totalorder %s38, 0
      %p469 = por %p467, %p468
      %p470 = scmp.le.s32.totalorder 1, %s32
      %p471 = scmp.lt.s32.totalorder %s32, 4
      %p472 = pnand %p470, %p471
      %p473 = pneg %p472
      // Predicated region
      $region9: #{moco_forward.1} parent=5 // pred_check
        _
      $region10: #{moco_forward.1} parent=5 // pred_check_branch
        %475 = sbr.rel (%p472) target = $region12
      $region11: #{moco_forward.1} parent=5 // pred_region
        %s476 = ssub.s32 %s32, 1
        // Predicated region
        $region13: #{moco_forward.1} parent=11 // pred_check
          %p477 = pneg %p53
        $region14: #{moco_forward.1} parent=11 // pred_check_branch
          %479 = sbr.rel (%p477) target = $region16
        $region15: #{moco_forward.1} parent=11 // pred_region
          _
        $region16: #{moco_forward.1} parent=11 // pred_fallthru
          _
        // Predicated region
        $region17: #{moco_forward.1} parent=11 // pred_check
          %p480 = pneg %p74
        $region18: #{moco_forward.1} parent=11 // pred_check_branch
          %482 = sbr.rel (%p480) target = $region20
        $region19: #{moco_forward.1} parent=11 // pred_region
          _
        $region20: #{moco_forward.1} parent=11 // pred_fallthru
          _
        // Predicated region
        $region21: #{moco_forward.1} parent=11 // pred_check
          %p483 = pneg %p95
        $region22: #{moco_forward.1} parent=11 // pred_check_branch
          %485 = sbr.rel (%p483) target = $region24
        $region23: #{moco_forward.1} parent=11 // pred_region
          _
        $region24: #{moco_forward.1} parent=11 // pred_fallthru
          _
        // Predicated region
        $region25: #{moco_forward.1} parent=11 // pred_check
          %p486 = pneg %p116
        $region26: #{moco_forward.1} parent=11 // pred_check_branch
          %488 = sbr.rel (%p486) target = $region28
        $region27: #{moco_forward.1} parent=11 // pred_region
          %490 = vsyncadd [#allocation7], 0
          %s491 = sshll.u32 %s3, 4
          %s492 = int_to_ptr.hbm [resolvable:$true] %s491
          %s493 = sshll.u32 [#allocation6], 4
          %s494 = int_to_ptr.vmem [resolvable:$true] %s493
          %499 = dma.hbm_to_vmem [thread:$0]  %s492, 12288, %s494, [#allocation7], 128, 128, 8
        $region28: #{moco_forward.1} parent=11 // pred_fallthru
          _
        // Predicated region
        $region29: #{moco_forward.1} parent=11 // pred_check
          %p500 = pneg %p137
        $region30: #{moco_forward.1} parent=11 // pred_check_branch
          %502 = sbr.rel (%p500) target = $region32
        $region31: #{moco_forward.1} parent=11 // pred_region
          _
        $region32: #{moco_forward.1} parent=11 // pred_fallthru
          _
        // Predicated region
        $region33: #{moco_forward.1} parent=11 // pred_check
          %p503 = pneg %p158
        $region34: #{moco_forward.1} parent=11 // pred_check_branch
          %505 = sbr.rel (%p503) target = $region36
        $region35: #{moco_forward.1} parent=11 // pred_region
          %507 = vsyncadd [#allocation10], 0
          %s508 = sshll.u32 %s5, 4
          %s509 = int_to_ptr.hbm [resolvable:$true] %s508
          %s510 = sshll.u32 [#allocation9], 4
          %s511 = int_to_ptr.vmem [resolvable:$true] %s510
          %516 = dma.hbm_to_vmem [thread:$0]  %s509, 2048, %s511, [#allocation10], 128, 128, 8
        $region36: #{moco_forward.1} parent=11 // pred_fallthru
          _
        // Predicated region
        $region37: #{moco_forward.1} parent=11 // pred_check
          %p517 = pneg %p179
        $region38: #{moco_forward.1} parent=11 // pred_check_branch
          %519 = sbr.rel (%p517) target = $region40
        $region39: #{moco_forward.1} parent=11 // pred_region
          _
        $region40: #{moco_forward.1} parent=11 // pred_fallthru
          _
        // Predicated region
        $region41: #{moco_forward.1} parent=11 // pred_check
          %p520 = pneg %p200
        $region42: #{moco_forward.1} parent=11 // pred_check_branch
          %522 = sbr.rel (%p520) target = $region44
        $region43: #{moco_forward.1} parent=11 // pred_region
          _
        $region44: #{moco_forward.1} parent=11 // pred_fallthru
          _
        // Predicated region
        $region45: #{moco_forward.1} parent=11 // pred_check
          %p523 = pneg %p221
        $region46: #{moco_forward.1} parent=11 // pred_check_branch
          %525 = sbr.rel (%p523) target = $region48
        $region47: #{moco_forward.1} parent=11 // pred_region
          _
        $region48: #{moco_forward.1} parent=11 // pred_fallthru
          _
        // Predicated region
        $region49: #{moco_forward.1} parent=11 // pred_check
          %p526 = pneg %p242
        $region50: #{moco_forward.1} parent=11 // pred_check_branch
          %528 = sbr.rel (%p526) target = $region52
        $region51: #{moco_forward.1} parent=11 // pred_region
          %530 = vsyncadd [#allocation10], 0
          %s531 = sshll.u32 %s9, 4
          %s532 = int_to_ptr.hbm [resolvable:$true] %s531
          %s533 = sshll.u32 [#allocation11], 4
          %s534 = int_to_ptr.vmem [resolvable:$true] %s533
          %539 = dma.hbm_to_vmem [thread:$0]  %s532, 2048, %s534, [#allocation10], 128, 128, 8
        $region52: #{moco_forward.1} parent=11 // pred_fallthru
          _
        // Predicated region
        $region53: #{moco_forward.1} parent=11 // pred_check
          %p540 = pneg %p263
        $region54: #{moco_forward.1} parent=11 // pred_check_branch
          %542 = sbr.rel (%p540) target = $region56
        $region55: #{moco_forward.1} parent=11 // pred_region
          _
        $region56: #{moco_forward.1} parent=11 // pred_fallthru
          _
      $region12: #{moco_forward.1} parent=5 // pred_fallthru
        _
      %p543 = scmp.lt.s32.totalorder %s32, 3
      // Predicated region
      $region57: #{moco_forward.1} parent=5 // pred_check
        %p544 = pneg %p543
      $region58: #{moco_forward.1} parent=5 // pred_check_branch
        %546 = sbr.rel (%p544) target = $region60
      $region59: #{moco_forward.1} parent=5 // pred_region
        // Predicated region
        $region61: #{moco_forward.1} parent=59 // pred_check
          %p547 = pneg %p283
        $region62: #{moco_forward.1} parent=59 // pred_check_branch
          %549 = sbr.rel (%p547) target = $region64
        $region63: #{moco_forward.1} parent=59 // pred_region
          %s550 = smul.u32 16, %s32
          %p551 = scmp.lt.s32.totalorder %s550, 47
          %s552 = scalar_select %p551, %s550, 47
          %s553 = smul.addr %s552, 4
          %s554 = scalar_lea.vmem %s11, %s553
          %s555 = smul.u32 16, %s32
        $region64: #{moco_forward.1} parent=59 // pred_fallthru
          _
      $region60: #{moco_forward.1} parent=5 // pred_fallthru
        _
      %p556 = scmp.le.s32.totalorder 1, %s32
      %p557 = scmp.lt.s32.totalorder %s32, 4
      %p558 = pnand %p556, %p557
      %p559 = pneg %p558
      // Predicated region
      $region65: #{moco_forward.1} parent=5 // pred_check
        _
      $region66: #{moco_forward.1} parent=5 // pred_check_branch
        %561 = sbr.rel (%p558) target = $region68
      $region67: #{moco_forward.1} parent=5 // pred_region
        %s562 = ssub.s32 %s32, 1
        // Predicated region
        $region69: #{moco_forward.1} parent=67 // pred_check
          %p563 = pneg %p116
        $region70: #{moco_forward.1} parent=67 // pred_check_branch
          %565 = sbr.rel (%p563) target = $region72
        $region71: #{moco_forward.1} parent=67 // pred_region
          %567 = dma.done [#allocation7], 12288
        $region72: #{moco_forward.1} parent=67 // pred_fallthru
          _
        // Predicated region
        $region73: #{moco_forward.1} parent=67 // pred_check
          %p568 = pneg %p158
        $region74: #{moco_forward.1} parent=67 // pred_check_branch
          %570 = sbr.rel (%p568) target = $region76
        $region75: #{moco_forward.1} parent=67 // pred_region
          %572 = dma.done [#allocation10], 2048
        $region76: #{moco_forward.1} parent=67 // pred_fallthru
          _
        // Predicated region
        $region77: #{moco_forward.1} parent=67 // pred_check
          %p573 = pneg %p242
        $region78: #{moco_forward.1} parent=67 // pred_check_branch
          %575 = sbr.rel (%p573) target = $region80
        $region79: #{moco_forward.1} parent=67 // pred_region
          %577 = dma.done [#allocation10], 2048
        $region80: #{moco_forward.1} parent=67 // pred_fallthru
          _
        %p578 = pneg %p53
        %p579 = pneg %p50
        %p580 = pneg %p74
        %p581 = pneg %p71
        %p582 = pneg %p95
        %p583 = pneg %p92
        %p584 = pneg %p116
        %p585 = pneg %p113
        %p586 = pneg %p137
        %p587 = pneg %p134
        %p588 = pneg %p158
        %p589 = pneg %p155
        %p590 = pneg %p179
        %p591 = pneg %p176
        %p592 = pneg %p200
        %p593 = pneg %p197
        %p594 = pneg %p221
        %p595 = pneg %p218
        %p596 = pneg %p242
        %p597 = pneg %p239
        %p598 = pneg %p263
        %p599 = pneg %p260
        %s600 = smul.u32 16, %s37
        %p601 = scmp.lt.s32.totalorder %s600, 47
        %s602 = scalar_select %p601, %s600, 47
        %s603 = smul.addr %s602, 4
        %s604 = scalar_lea.vmem %s11, %s603
        %p605 = pneg %p289
        %p606 = pneg %p286
        %p607 = pneg %p310
        %p608 = pneg %p307
        %p609 = pneg %p331
        %p610 = pneg %p328
        %p611 = pneg %p352
        %p612 = pneg %p349
        %p613 = pneg %p378
        %p614 = pneg %p375
        %s615 = sand.u32 %s365, 1
        %s616 = sand.u32 %s365, 1
        %s617 = smul.addr %s616, 16
        %s618 = scalar_lea.vmem [#allocation15], %s617
        %p619 = pneg %p399
        %p620 = pneg %p396
        %p621 = pneg %p420
        %p622 = pneg %p417
        %p623 = pneg %p441
        %p624 = pneg %p438
        %p625 = pneg %p462
        %p626 = pneg %p459
        %s627 = smul.u32 16, %s37
        %p628 = scmp.lt.s32.totalorder %s627, 47
        %s629 = scalar_select %p628, %s627, 47
        %s630 = smul.addr %s629, 4
        %s631 = scalar_lea.vmem %s11, %s630
        %s632 = smul.u32 16, %s37
        %p633 = scmp.eq.s32.totalorder %s37, 0
        // Predicated region
        $region81: #{moco_forward.1} parent=67 // pred_check
          %p634 = pneg %p633
        $region82: #{moco_forward.1} parent=67 // pred_check_branch
          %636 = sbr.rel (%p634) target = $region84
        $region83: #{moco_forward.1} parent=67 // pred_region
          %v637 = vld [vmem:[%s1] sm:$0xff]
          %v638 = vld [vmem:[%s1 + $0x8] sm:$0xff]
          %v639 = vld [vmem:[%s1 + $0x10] sm:$0xff]
          %v640 = vld [vmem:[%s1 + $0x18] sm:$0xff]
          %v641 = vld [vmem:[%s1 + $0x20] sm:$0xff]
          %v642 = vld [vmem:[%s1 + $0x28] sm:$0xff]
          %v643 = vld [vmem:[%s1 + $0x30] sm:$0xff]
          %v644 = vld [vmem:[%s1 + $0x38] sm:$0xff]
          %v645 = vld [vmem:[%s1 + $0x40] sm:$0xff]
          %v646 = vld [vmem:[%s1 + $0x48] sm:$0xff]
          %v647 = vld [vmem:[%s1 + $0x50] sm:$0xff]
          %v648 = vld [vmem:[%s1 + $0x58] sm:$0xff]
          %v649 = vpack.c.bf16 %v643, %v637
          %v650 = vpack.c.bf16 %v644, %v638
          %v651 = vpack.c.bf16 %v645, %v639
          %v652 = vpack.c.bf16 %v646, %v640
          %v653 = vpack.c.bf16 %v647, %v641
          %v654 = vpack.c.bf16 %v648, %v642
          %v655 = vld [vmem:[#allocation6] sm:$0xff]
          %v656 = vld [vmem:[#allocation6 + $0x8] sm:$0xff]
          %v657 = vld [vmem:[#allocation6 + $0x10] sm:$0xff]
          %v658 = vld [vmem:[#allocation6 + $0x18] sm:$0xff]
          %v659 = vld [vmem:[#allocation6 + $0x20] sm:$0xff]
          %v660 = vld [vmem:[#allocation6 + $0x28] sm:$0xff]
          %v661 = vld [vmem:[#allocation6 + $0x30] sm:$0xff]
          %v662 = vld [vmem:[#allocation6 + $0x38] sm:$0xff]
          %v663 = vld [vmem:[#allocation6 + $0x40] sm:$0xff]
          %v664 = vld [vmem:[#allocation6 + $0x48] sm:$0xff]
          %v665 = vld [vmem:[#allocation6 + $0x50] sm:$0xff]
          %v666 = vld [vmem:[#allocation6 + $0x58] sm:$0xff]
          %v667 = vld [vmem:[#allocation6 + $0x60] sm:$0xff]
          %v668 = vld [vmem:[#allocation6 + $0x68] sm:$0xff]
          %v669 = vld [vmem:[#allocation6 + $0x70] sm:$0xff]
          %v670 = vld [vmem:[#allocation6 + $0x78] sm:$0xff]
          %v671 = vld [vmem:[#allocation6 + $0x80] sm:$0xff]
          %v672 = vld [vmem:[#allocation6 + $0x88] sm:$0xff]
          %v673 = vld [vmem:[#allocation6 + $0x90] sm:$0xff]
          %v674 = vld [vmem:[#allocation6 + $0x98] sm:$0xff]
          %v675 = vld [vmem:[#allocation6 + $0xa0] sm:$0xff]
          %v676 = vld [vmem:[#allocation6 + $0xa8] sm:$0xff]
          %v677 = vld [vmem:[#allocation6 + $0xb0] sm:$0xff]
          %v678 = vld [vmem:[#allocation6 + $0xb8] sm:$0xff]
          %v679 = vld [vmem:[#allocation6 + $0xc0] sm:$0xff]
          %v680 = vld [vmem:[#allocation6 + $0xc8] sm:$0xff]
          %v681 = vld [vmem:[#allocation6 + $0xd0] sm:$0xff]
          %v682 = vld [vmem:[#allocation6 + $0xd8] sm:$0xff]
          %v683 = vld [vmem:[#allocation6 + $0xe0] sm:$0xff]
          %v684 = vld [vmem:[#allocation6 + $0xe8] sm:$0xff]
          %v685 = vld [vmem:[#allocation6 + $0xf0] sm:$0xff]
          %v686 = vld [vmem:[#allocation6 + $0xf8] sm:$0xff]
          %v687 = vld [vmem:[#allocation6 + $0x100] sm:$0xff]
          %v688 = vld [vmem:[#allocation6 + $0x108] sm:$0xff]
          %v689 = vld [vmem:[#allocation6 + $0x110] sm:$0xff]
          %v690 = vld [vmem:[#allocation6 + $0x118] sm:$0xff]
          %v691 = vld [vmem:[#allocation6 + $0x120] sm:$0xff]
          %v692 = vld [vmem:[#allocation6 + $0x128] sm:$0xff]
          %v693 = vld [vmem:[#allocation6 + $0x130] sm:$0xff]
          %v694 = vld [vmem:[#allocation6 + $0x138] sm:$0xff]
          %v695 = vld [vmem:[#allocation6 + $0x140] sm:$0xff]
          %v696 = vld [vmem:[#allocation6 + $0x148] sm:$0xff]
          %v697 = vld [vmem:[#allocation6 + $0x150] sm:$0xff]
          %v698 = vld [vmem:[#allocation6 + $0x158] sm:$0xff]
          %v699 = vld [vmem:[#allocation6 + $0x160] sm:$0xff]
          %v700 = vld [vmem:[#allocation6 + $0x168] sm:$0xff]
          %v701 = vld [vmem:[#allocation6 + $0x170] sm:$0xff]
          %v702 = vld [vmem:[#allocation6 + $0x178] sm:$0xff]
          %v703 = vld [vmem:[#allocation6 + $0x180] sm:$0xff]
          %v704 = vld [vmem:[#allocation6 + $0x188] sm:$0xff]
          %v705 = vld [vmem:[#allocation6 + $0x190] sm:$0xff]
          %v706 = vld [vmem:[#allocation6 + $0x198] sm:$0xff]
          %v707 = vld [vmem:[#allocation6 + $0x1a0] sm:$0xff]
          %v708 = vld [vmem:[#allocation6 + $0x1a8] sm:$0xff]
          %v709 = vld [vmem:[#allocation6 + $0x1b0] sm:$0xff]
          %v710 = vld [vmem:[#allocation6 + $0x1b8] sm:$0xff]
          %v711 = vld [vmem:[#allocation6 + $0x1c0] sm:$0xff]
          %v712 = vld [vmem:[#allocation6 + $0x1c8] sm:$0xff]
          %v713 = vld [vmem:[#allocation6 + $0x1d0] sm:$0xff]
          %v714 = vld [vmem:[#allocation6 + $0x1d8] sm:$0xff]
          %v715 = vld [vmem:[#allocation6 + $0x1e0] sm:$0xff]
          %v716 = vld [vmem:[#allocation6 + $0x1e8] sm:$0xff]
          %v717 = vld [vmem:[#allocation6 + $0x1f0] sm:$0xff]
          %v718 = vld [vmem:[#allocation6 + $0x1f8] sm:$0xff]
          %v719 = vld [vmem:[#allocation6 + $0x200] sm:$0xff]
          %v720 = vld [vmem:[#allocation6 + $0x208] sm:$0xff]
          %v721 = vld [vmem:[#allocation6 + $0x210] sm:$0xff]
          %v722 = vld [vmem:[#allocation6 + $0x218] sm:$0xff]
          %v723 = vld [vmem:[#allocation6 + $0x220] sm:$0xff]
          %v724 = vld [vmem:[#allocation6 + $0x228] sm:$0xff]
          %v725 = vld [vmem:[#allocation6 + $0x230] sm:$0xff]
          %v726 = vld [vmem:[#allocation6 + $0x238] sm:$0xff]
          %v727 = vld [vmem:[#allocation6 + $0x240] sm:$0xff]
          %v728 = vld [vmem:[#allocation6 + $0x248] sm:$0xff]
          %v729 = vld [vmem:[#allocation6 + $0x250] sm:$0xff]
          %v730 = vld [vmem:[#allocation6 + $0x258] sm:$0xff]
          %v731 = vld [vmem:[#allocation6 + $0x260] sm:$0xff]
          %v732 = vld [vmem:[#allocation6 + $0x268] sm:$0xff]
          %v733 = vld [vmem:[#allocation6 + $0x270] sm:$0xff]
          %v734 = vld [vmem:[#allocation6 + $0x278] sm:$0xff]
          %v735 = vld [vmem:[#allocation6 + $0x280] sm:$0xff]
          %v736 = vld [vmem:[#allocation6 + $0x288] sm:$0xff]
          %v737 = vld [vmem:[#allocation6 + $0x290] sm:$0xff]
          %v738 = vld [vmem:[#allocation6 + $0x298] sm:$0xff]
          %v739 = vld [vmem:[#allocation6 + $0x2a0] sm:$0xff]
          %v740 = vld [vmem:[#allocation6 + $0x2a8] sm:$0xff]
          %v741 = vld [vmem:[#allocation6 + $0x2b0] sm:$0xff]
          %v742 = vld [vmem:[#allocation6 + $0x2b8] sm:$0xff]
          %v743 = vld [vmem:[#allocation6 + $0x2c0] sm:$0xff]
          %v744 = vld [vmem:[#allocation6 + $0x2c8] sm:$0xff]
          %v745 = vld [vmem:[#allocation6 + $0x2d0] sm:$0xff]
          %v746 = vld [vmem:[#allocation6 + $0x2d8] sm:$0xff]
          %v747 = vld [vmem:[#allocation6 + $0x2e0] sm:$0xff]
          %v748 = vld [vmem:[#allocation6 + $0x2e8] sm:$0xff]
          %v749 = vld [vmem:[#allocation6 + $0x2f0] sm:$0xff]
          %v750 = vld [vmem:[#allocation6 + $0x2f8] sm:$0xff]
          %v751 = vpack.c.bf16 %v656, %v655
          %v752 = vpack.c.bf16 %v658, %v657
          %v753 = vpack.c.bf16 %v660, %v659
          %v754 = vpack.c.bf16 %v662, %v661
          %v755 = vpack.c.bf16 %v664, %v663
          %v756 = vpack.c.bf16 %v666, %v665
          %v757 = vpack.c.bf16 %v668, %v667
          %v758 = vpack.c.bf16 %v670, %v669
          %v759 = vpack.c.bf16 %v672, %v671
          %v760 = vpack.c.bf16 %v674, %v673
          %v761 = vpack.c.bf16 %v676, %v675
          %v762 = vpack.c.bf16 %v678, %v677
          %v763 = vpack.c.bf16 %v680, %v679
          %v764 = vpack.c.bf16 %v682, %v681
          %v765 = vpack.c.bf16 %v684, %v683
          %v766 = vpack.c.bf16 %v686, %v685
          %v767 = vpack.c.bf16 %v688, %v687
          %v768 = vpack.c.bf16 %v690, %v689
          %v769 = vpack.c.bf16 %v692, %v691
          %v770 = vpack.c.bf16 %v694, %v693
          %v771 = vpack.c.bf16 %v696, %v695
          %v772 = vpack.c.bf16 %v698, %v697
          %v773 = vpack.c.bf16 %v700, %v699
          %v774 = vpack.c.bf16 %v702, %v701
          %v775 = vpack.c.bf16 %v704, %v703
          %v776 = vpack.c.bf16 %v706, %v705
          %v777 = vpack.c.bf16 %v708, %v707
          %v778 = vpack.c.bf16 %v710, %v709
          %v779 = vpack.c.bf16 %v712, %v711
          %v780 = vpack.c.bf16 %v714, %v713
          %v781 = vpack.c.bf16 %v716, %v715
          %v782 = vpack.c.bf16 %v718, %v717
          %v783 = vpack.c.bf16 %v720, %v719
          %v784 = vpack.c.bf16 %v722, %v721
          %v785 = vpack.c.bf16 %v724, %v723
          %v786 = vpack.c.bf16 %v726, %v725
          %v787 = vpack.c.bf16 %v728, %v727
          %v788 = vpack.c.bf16 %v730, %v729
          %v789 = vpack.c.bf16 %v732, %v731
          %v790 = vpack.c.bf16 %v734, %v733
          %v791 = vpack.c.bf16 %v736, %v735
          %v792 = vpack.c.bf16 %v738, %v737
          %v793 = vpack.c.bf16 %v740, %v739
          %v794 = vpack.c.bf16 %v742, %v741
          %v795 = vpack.c.bf16 %v744, %v743
          %v796 = vpack.c.bf16 %v746, %v745
          %v797 = vpack.c.bf16 %v748, %v747
          %v798 = vpack.c.bf16 %v750, %v749
          %v799 = vld [vmem:[%s4] sm:$0x1]
          %v801 = vperm.slane %v799, 0
          %803 = vmatpush.bf16.msra.mxu0 %v758
          %804 = vmatpush.bf16.msra.mxu0 %v757
          %805 = vmatpush.bf16.msra.mxu0 %v756
          %806 = vmatpush.bf16.msra.mxu0 %v755
          %807 = vmatpush.bf16.msra.mxu0 %v754
          %808 = vmatpush.bf16.msra.mxu0 %v753
          %809 = vmatpush.bf16.msra.mxu0 %v752
          %810 = vmatpush.bf16.msra.mxu0 %v751
          %811 = vmatmul.bf16.gmra.mxu0 %v649
          %v812 = vpop.f32.mrf.mxu0
          %v813 = vadd.f32 %v801, %v812
          %v814 = vpop.f32.mrf.mxu0
          %v815 = vadd.f32 %v801, %v814
          %816 = vdwg.mxu0
          %817 = vmatpush.bf16.msra.mxu0 %v766
          %818 = vmatpush.bf16.msra.mxu0 %v765
          %819 = vmatpush.bf16.msra.mxu0 %v764
          %820 = vmatpush.bf16.msra.mxu0 %v763
          %821 = vmatpush.bf16.msra.mxu0 %v762
          %822 = vmatpush.bf16.msra.mxu0 %v761
          %823 = vmatpush.bf16.msra.mxu0 %v760
          %824 = vmatpush.bf16.msra.mxu0 %v759
          %825 = vmatmul.bf16.gmra.mxu0 %v650
          %v826 = vpop.f32.mrf.mxu0
          %v827 = vadd.f32 %v813, %v826
          %v828 = vpop.f32.mrf.mxu0
          %v829 = vadd.f32 %v815, %v828
          %830 = vdwg.mxu0
          %831 = vmatpush.bf16.msra.mxu0 %v774
          %832 = vmatpush.bf16.msra.mxu0 %v773
          %833 = vmatpush.bf16.msra.mxu0 %v772
          %834 = vmatpush.bf16.msra.mxu0 %v771
          %835 = vmatpush.bf16.msra.mxu0 %v770
          %836 = vmatpush.bf16.msra.mxu0 %v769
          %837 = vmatpush.bf16.msra.mxu0 %v768
          %838 = vmatpush.bf16.msra.mxu0 %v767
          %839 = vmatmul.bf16.gmra.mxu0 %v651
          %v840 = vpop.f32.mrf.mxu0
          %v841 = vadd.f32 %v827, %v840
          %v842 = vpop.f32.mrf.mxu0
          %v843 = vadd.f32 %v829, %v842
          %844 = vdwg.mxu0
          %845 = vmatpush.bf16.msra.mxu0 %v782
          %846 = vmatpush.bf16.msra.mxu0 %v781
          %847 = vmatpush.bf16.msra.mxu0 %v780
          %848 = vmatpush.bf16.msra.mxu0 %v779
          %849 = vmatpush.bf16.msra.mxu0 %v778
          %850 = vmatpush.bf16.msra.mxu0 %v777
          %851 = vmatpush.bf16.msra.mxu0 %v776
          %852 = vmatpush.bf16.msra.mxu0 %v775
          %853 = vmatmul.bf16.gmra.mxu0 %v652
          %v854 = vpop.f32.mrf.mxu0
          %v855 = vadd.f32 %v841, %v854
          %v856 = vpop.f32.mrf.mxu0
          %v857 = vadd.f32 %v843, %v856
          %858 = vdwg.mxu0
          %859 = vmatpush.bf16.msra.mxu0 %v790
          %860 = vmatpush.bf16.msra.mxu0 %v789
          %861 = vmatpush.bf16.msra.mxu0 %v788
          %862 = vmatpush.bf16.msra.mxu0 %v787
          %863 = vmatpush.bf16.msra.mxu0 %v786
          %864 = vmatpush.bf16.msra.mxu0 %v785
          %865 = vmatpush.bf16.msra.mxu0 %v784
          %866 = vmatpush.bf16.msra.mxu0 %v783
          %867 = vmatmul.bf16.gmra.mxu0 %v653
          %v868 = vpop.f32.mrf.mxu0
          %v869 = vadd.f32 %v855, %v868
          %v870 = vpop.f32.mrf.mxu0
          %v871 = vadd.f32 %v857, %v870
          %872 = vdwg.mxu0
          %873 = vmatpush.bf16.msra.mxu0 %v798
          %874 = vmatpush.bf16.msra.mxu0 %v797
          %875 = vmatpush.bf16.msra.mxu0 %v796
          %876 = vmatpush.bf16.msra.mxu0 %v795
          %877 = vmatpush.bf16.msra.mxu0 %v794
          %878 = vmatpush.bf16.msra.mxu0 %v793
          %879 = vmatpush.bf16.msra.mxu0 %v792
          %880 = vmatpush.bf16.msra.mxu0 %v791
          %881 = vmatmul.bf16.gmra.mxu0 %v654
          %v882 = vpop.f32.mrf.mxu0
          %v883 = vadd.f32 %v869, %v882
          %v884 = vpop.f32.mrf.mxu0
          %v885 = vadd.f32 %v871, %v884
          %886 = vdwg.mxu0
          %v887 = vmax.f32 %v883, 0.0
          %v888 = vmax.f32 %v885, 0.0
          %v889 = vpack.c.bf16 %v888, %v887
          %v890 = vld [vmem:[#allocation9] sm:$0xff]
          %v891 = vld [vmem:[#allocation9 + $0x8] sm:$0xff]
          %v892 = vld [vmem:[#allocation9 + $0x10] sm:$0xff]
          %v893 = vld [vmem:[#allocation9 + $0x18] sm:$0xff]
          %v894 = vld [vmem:[#allocation9 + $0x20] sm:$0xff]
          %v895 = vld [vmem:[#allocation9 + $0x28] sm:$0xff]
          %v896 = vld [vmem:[#allocation9 + $0x30] sm:$0xff]
          %v897 = vld [vmem:[#allocation9 + $0x38] sm:$0xff]
          %v898 = vld [vmem:[#allocation9 + $0x40] sm:$0xff]
          %v899 = vld [vmem:[#allocation9 + $0x48] sm:$0xff]
          %v900 = vld [vmem:[#allocation9 + $0x50] sm:$0xff]
          %v901 = vld [vmem:[#allocation9 + $0x58] sm:$0xff]
          %v902 = vld [vmem:[#allocation9 + $0x60] sm:$0xff]
          %v903 = vld [vmem:[#allocation9 + $0x68] sm:$0xff]
          %v904 = vld [vmem:[#allocation9 + $0x70] sm:$0xff]
          %v905 = vld [vmem:[#allocation9 + $0x78] sm:$0xff]
          %v906 = vpack.c.bf16 %v891, %v890
          %v907 = vpack.c.bf16 %v893, %v892
          %v908 = vpack.c.bf16 %v895, %v894
          %v909 = vpack.c.bf16 %v897, %v896
          %v910 = vpack.c.bf16 %v899, %v898
          %v911 = vpack.c.bf16 %v901, %v900
          %v912 = vpack.c.bf16 %v903, %v902
          %v913 = vpack.c.bf16 %v905, %v904
          %v914 = vld [vmem:[%s6] sm:$0x1]
          %v916 = vperm.slane %v914, 0
          %918 = vmatpush.bf16.msra.mxu0 %v913
          %919 = vmatpush.bf16.msra.mxu0 %v912
          %920 = vmatpush.bf16.msra.mxu0 %v911
          %921 = vmatpush.bf16.msra.mxu0 %v910
          %922 = vmatpush.bf16.msra.mxu0 %v909
          %923 = vmatpush.bf16.msra.mxu0 %v908
          %924 = vmatpush.bf16.msra.mxu0 %v907
          %925 = vmatpush.bf16.msra.mxu0 %v906
          %926 = vmatmul.bf16.gmra.mxu0 %v889
          %v927 = vpop.f32.mrf.mxu0
          %v928 = vadd.f32 %v916, %v927
          %v929 = vpop.f32.mrf.mxu0
          %v930 = vadd.f32 %v916, %v929
          %931 = vdwg.mxu0
          %932 = vst [vmem:[#allocation12] sm:$0xff] %v887
          %933 = vst [vmem:[#allocation12 + $0x8] sm:$0xff] %v888
          %934 = vst [vmem:[#allocation13] sm:$0xff] %v883
          %935 = vst [vmem:[#allocation13 + $0x8] sm:$0xff] %v885
          %v936 = vld [vmem:[%s7] sm:$0xff]
          %v937 = vld [vmem:[%s7 + $0x8] sm:$0xff]
          %v938 = vld [vmem:[%s7 + $0x10] sm:$0xff]
          %v939 = vld [vmem:[%s7 + $0x18] sm:$0xff]
          %v940 = vld [vmem:[%s7 + $0x20] sm:$0xff]
          %v941 = vld [vmem:[%s7 + $0x28] sm:$0xff]
          %v942 = vld [vmem:[%s7 + $0x30] sm:$0xff]
          %v943 = vld [vmem:[%s7 + $0x38] sm:$0xff]
          %v944 = vld [vmem:[%s7 + $0x40] sm:$0xff]
          %v945 = vld [vmem:[%s7 + $0x48] sm:$0xff]
          %v946 = vld [vmem:[%s7 + $0x50] sm:$0xff]
          %v947 = vld [vmem:[%s7 + $0x58] sm:$0xff]
          %v948 = vld [vmem:[%s7 + $0x60] sm:$0xff]
          %v949 = vld [vmem:[%s7 + $0x68] sm:$0xff]
          %v950 = vld [vmem:[%s7 + $0x70] sm:$0xff]
          %v951 = vld [vmem:[%s7 + $0x78] sm:$0xff]
          %v952 = vld [vmem:[%s7 + $0x80] sm:$0xff]
          %v953 = vld [vmem:[%s7 + $0x88] sm:$0xff]
          %v954 = vld [vmem:[%s7 + $0x90] sm:$0xff]
          %v955 = vld [vmem:[%s7 + $0x98] sm:$0xff]
          %v956 = vld [vmem:[%s7 + $0xa0] sm:$0xff]
          %v957 = vld [vmem:[%s7 + $0xa8] sm:$0xff]
          %v958 = vld [vmem:[%s7 + $0xb0] sm:$0xff]
          %v959 = vld [vmem:[%s7 + $0xb8] sm:$0xff]
          %v960 = vld [vmem:[%s7 + $0xc0] sm:$0xff]
          %v961 = vld [vmem:[%s7 + $0xc8] sm:$0xff]
          %v962 = vld [vmem:[%s7 + $0xd0] sm:$0xff]
          %v963 = vld [vmem:[%s7 + $0xd8] sm:$0xff]
          %v964 = vld [vmem:[%s7 + $0xe0] sm:$0xff]
          %v965 = vld [vmem:[%s7 + $0xe8] sm:$0xff]
          %v966 = vld [vmem:[%s7 + $0xf0] sm:$0xff]
          %v967 = vld [vmem:[%s7 + $0xf8] sm:$0xff]
          %v968 = vld [vmem:[%s7 + $0x100] sm:$0xff]
          %v969 = vld [vmem:[%s7 + $0x108] sm:$0xff]
          %v970 = vld [vmem:[%s7 + $0x110] sm:$0xff]
          %v971 = vld [vmem:[%s7 + $0x118] sm:$0xff]
          %v972 = vld [vmem:[%s7 + $0x120] sm:$0xff]
          %v973 = vld [vmem:[%s7 + $0x128] sm:$0xff]
          %v974 = vld [vmem:[%s7 + $0x130] sm:$0xff]
          %v975 = vld [vmem:[%s7 + $0x138] sm:$0xff]
          %v976 = vld [vmem:[%s7 + $0x140] sm:$0xff]
          %v977 = vld [vmem:[%s7 + $0x148] sm:$0xff]
          %v978 = vld [vmem:[%s7 + $0x150] sm:$0xff]
          %v979 = vld [vmem:[%s7 + $0x158] sm:$0xff]
          %v980 = vld [vmem:[%s7 + $0x160] sm:$0xff]
          %v981 = vld [vmem:[%s7 + $0x168] sm:$0xff]
          %v982 = vld [vmem:[%s7 + $0x170] sm:$0xff]
          %v983 = vld [vmem:[%s7 + $0x178] sm:$0xff]
          %v984 = vld [vmem:[%s7 + $0x180] sm:$0xff]
          %v985 = vld [vmem:[%s7 + $0x188] sm:$0xff]
          %v986 = vld [vmem:[%s7 + $0x190] sm:$0xff]
          %v987 = vld [vmem:[%s7 + $0x198] sm:$0xff]
          %v988 = vld [vmem:[%s7 + $0x1a0] sm:$0xff]
          %v989 = vld [vmem:[%s7 + $0x1a8] sm:$0xff]
          %v990 = vld [vmem:[%s7 + $0x1b0] sm:$0xff]
          %v991 = vld [vmem:[%s7 + $0x1b8] sm:$0xff]
          %v992 = vld [vmem:[%s7 + $0x1c0] sm:$0xff]
          %v993 = vld [vmem:[%s7 + $0x1c8] sm:$0xff]
          %v994 = vld [vmem:[%s7 + $0x1d0] sm:$0xff]
          %v995 = vld [vmem:[%s7 + $0x1d8] sm:$0xff]
          %v996 = vld [vmem:[%s7 + $0x1e0] sm:$0xff]
          %v997 = vld [vmem:[%s7 + $0x1e8] sm:$0xff]
          %v998 = vld [vmem:[%s7 + $0x1f0] sm:$0xff]
          %v999 = vld [vmem:[%s7 + $0x1f8] sm:$0xff]
          %v1000 = vld [vmem:[%s7 + $0x200] sm:$0xff]
          %v1001 = vld [vmem:[%s7 + $0x208] sm:$0xff]
          %v1002 = vld [vmem:[%s7 + $0x210] sm:$0xff]
          %v1003 = vld [vmem:[%s7 + $0x218] sm:$0xff]
          %v1004 = vld [vmem:[%s7 + $0x220] sm:$0xff]
          %v1005 = vld [vmem:[%s7 + $0x228] sm:$0xff]
          %v1006 = vld [vmem:[%s7 + $0x230] sm:$0xff]
          %v1007 = vld [vmem:[%s7 + $0x238] sm:$0xff]
          %v1008 = vld [vmem:[%s7 + $0x240] sm:$0xff]
          %v1009 = vld [vmem:[%s7 + $0x248] sm:$0xff]
          %v1010 = vld [vmem:[%s7 + $0x250] sm:$0xff]
          %v1011 = vld [vmem:[%s7 + $0x258] sm:$0xff]
          %v1012 = vld [vmem:[%s7 + $0x260] sm:$0xff]
          %v1013 = vld [vmem:[%s7 + $0x268] sm:$0xff]
          %v1014 = vld [vmem:[%s7 + $0x270] sm:$0xff]
          %v1015 = vld [vmem:[%s7 + $0x278] sm:$0xff]
          %v1016 = vld [vmem:[%s7 + $0x280] sm:$0xff]
          %v1017 = vld [vmem:[%s7 + $0x288] sm:$0xff]
          %v1018 = vld [vmem:[%s7 + $0x290] sm:$0xff]
          %v1019 = vld [vmem:[%s7 + $0x298] sm:$0xff]
          %v1020 = vld [vmem:[%s7 + $0x2a0] sm:$0xff]
          %v1021 = vld [vmem:[%s7 + $0x2a8] sm:$0xff]
          %v1022 = vld [vmem:[%s7 + $0x2b0] sm:$0xff]
          %v1023 = vld [vmem:[%s7 + $0x2b8] sm:$0xff]
          %v1024 = vld [vmem:[%s7 + $0x2c0] sm:$0xff]
          %v1025 = vld [vmem:[%s7 + $0x2c8] sm:$0xff]
          %v1026 = vld [vmem:[%s7 + $0x2d0] sm:$0xff]
          %v1027 = vld [vmem:[%s7 + $0x2d8] sm:$0xff]
          %v1028 = vld [vmem:[%s7 + $0x2e0] sm:$0xff]
          %v1029 = vld [vmem:[%s7 + $0x2e8] sm:$0xff]
          %v1030 = vld [vmem:[%s7 + $0x2f0] sm:$0xff]
          %v1031 = vld [vmem:[%s7 + $0x2f8] sm:$0xff]
          %v1032 = vmul.f32 %v936, 0.999
          %v1033 = vmul.f32 %v937, 0.999
          %v1034 = vmul.f32 %v938, 0.999
          %v1035 = vmul.f32 %v939, 0.999
          %v1036 = vmul.f32 %v940, 0.999
          %v1037 = vmul.f32 %v941, 0.999
          %v1038 = vmul.f32 %v942, 0.999
          %v1039 = vmul.f32 %v943, 0.999
          %v1040 = vmul.f32 %v944, 0.999
          %v1041 = vmul.f32 %v945, 0.999
          %v1042 = vmul.f32 %v946, 0.999
          %v1043 = vmul.f32 %v947, 0.999
          %v1044 = vmul.f32 %v948, 0.999
          %v1045 = vmul.f32 %v949, 0.999
          %v1046 = vmul.f32 %v950, 0.999
          %v1047 = vmul.f32 %v951, 0.999
          %v1048 = vmul.f32 %v952, 0.999
          %v1049 = vmul.f32 %v953, 0.999
          %v1050 = vmul.f32 %v954, 0.999
          %v1051 = vmul.f32 %v955, 0.999
          %v1052 = vmul.f32 %v956, 0.999
          %v1053 = vmul.f32 %v957, 0.999
          %v1054 = vmul.f32 %v958, 0.999
          %v1055 = vmul.f32 %v959, 0.999
          %v1056 = vmul.f32 %v960, 0.999
          %v1057 = vmul.f32 %v961, 0.999
          %v1058 = vmul.f32 %v962, 0.999
          %v1059 = vmul.f32 %v963, 0.999
          %v1060 = vmul.f32 %v964, 0.999
          %v1061 = vmul.f32 %v965, 0.999
          %v1062 = vmul.f32 %v966, 0.999
          %v1063 = vmul.f32 %v967, 0.999
          %v1064 = vmul.f32 %v968, 0.999
          %v1065 = vmul.f32 %v969, 0.999
          %v1066 = vmul.f32 %v970, 0.999
          %v1067 = vmul.f32 %v971, 0.999
          %v1068 = vmul.f32 %v972, 0.999
          %v1069 = vmul.f32 %v973, 0.999
          %v1070 = vmul.f32 %v974, 0.999
          %v1071 = vmul.f32 %v975, 0.999
          %v1072 = vmul.f32 %v976, 0.999
          %v1073 = vmul.f32 %v977, 0.999
          %v1074 = vmul.f32 %v978, 0.999
          %v1075 = vmul.f32 %v979, 0.999
          %v1076 = vmul.f32 %v980, 0.999
          %v1077 = vmul.f32 %v981, 0.999
          %v1078 = vmul.f32 %v982, 0.999
          %v1079 = vmul.f32 %v983, 0.999
          %v1080 = vmul.f32 %v984, 0.999
          %v1081 = vmul.f32 %v985, 0.999
          %v1082 = vmul.f32 %v986, 0.999
          %v1083 = vmul.f32 %v987, 0.999
          %v1084 = vmul.f32 %v988, 0.999
          %v1085 = vmul.f32 %v989, 0.999
          %v1086 = vmul.f32 %v990, 0.999
          %v1087 = vmul.f32 %v991, 0.999
          %v1088 = vmul.f32 %v992, 0.999
          %v1089 = vmul.f32 %v993, 0.999
          %v1090 = vmul.f32 %v994, 0.999
          %v1091 = vmul.f32 %v995, 0.999
          %v1092 = vmul.f32 %v996, 0.999
          %v1093 = vmul.f32 %v997, 0.999
          %v1094 = vmul.f32 %v998, 0.999
          %v1095 = vmul.f32 %v999, 0.999
          %v1096 = vmul.f32 %v1000, 0.999
          %v1097 = vmul.f32 %v1001, 0.999
          %v1098 = vmul.f32 %v1002, 0.999
          %v1099 = vmul.f32 %v1003, 0.999
          %v1100 = vmul.f32 %v1004, 0.999
          %v1101 = vmul.f32 %v1005, 0.999
          %v1102 = vmul.f32 %v1006, 0.999
          %v1103 = vmul.f32 %v1007, 0.999
          %v1104 = vmul.f32 %v1008, 0.999
          %v1105 = vmul.f32 %v1009, 0.999
          %v1106 = vmul.f32 %v1010, 0.999
          %v1107 = vmul.f32 %v1011, 0.999
          %v1108 = vmul.f32 %v1012, 0.999
          %v1109 = vmul.f32 %v1013, 0.999
          %v1110 = vmul.f32 %v1014, 0.999
          %v1111 = vmul.f32 %v1015, 0.999
          %v1112 = vmul.f32 %v1016, 0.999
          %v1113 = vmul.f32 %v1017, 0.999
          %v1114 = vmul.f32 %v1018, 0.999
          %v1115 = vmul.f32 %v1019, 0.999
          %v1116 = vmul.f32 %v1020, 0.999
          %v1117 = vmul.f32 %v1021, 0.999
          %v1118 = vmul.f32 %v1022, 0.999
          %v1119 = vmul.f32 %v1023, 0.999
          %v1120 = vmul.f32 %v1024, 0.999
          %v1121 = vmul.f32 %v1025, 0.999
          %v1122 = vmul.f32 %v1026, 0.999
          %v1123 = vmul.f32 %v1027, 0.999
          %v1124 = vmul.f32 %v1028, 0.999
          %v1125 = vmul.f32 %v1029, 0.999
          %v1126 = vmul.f32 %v1030, 0.999
          %v1127 = vmul.f32 %v1031, 0.999
          %v1128 = vld [vmem:[#allocation6] sm:$0xff]
          %v1129 = vld [vmem:[#allocation6 + $0x8] sm:$0xff]
          %v1130 = vld [vmem:[#allocation6 + $0x10] sm:$0xff]
          %v1131 = vld [vmem:[#allocation6 + $0x18] sm:$0xff]
          %v1132 = vld [vmem:[#allocation6 + $0x20] sm:$0xff]
          %v1133 = vld [vmem:[#allocation6 + $0x28] sm:$0xff]
          %v1134 = vld [vmem:[#allocation6 + $0x30] sm:$0xff]
          %v1135 = vld [vmem:[#allocation6 + $0x38] sm:$0xff]
          %v1136 = vld [vmem:[#allocation6 + $0x40] sm:$0xff]
          %v1137 = vld [vmem:[#allocation6 + $0x48] sm:$0xff]
          %v1138 = vld [vmem:[#allocation6 + $0x50] sm:$0xff]
          %v1139 = vld [vmem:[#allocation6 + $0x58] sm:$0xff]
          %v1140 = vld [vmem:[#allocation6 + $0x60] sm:$0xff]
          %v1141 = vld [vmem:[#allocation6 + $0x68] sm:$0xff]
          %v1142 = vld [vmem:[#allocation6 + $0x70] sm:$0xff]
          %v1143 = vld [vmem:[#allocation6 + $0x78] sm:$0xff]
          %v1144 = vld [vmem:[#allocation6 + $0x80] sm:$0xff]
          %v1145 = vld [vmem:[#allocation6 + $0x88] sm:$0xff]
          %v1146 = vld [vmem:[#allocation6 + $0x90] sm:$0xff]
          %v1147 = vld [vmem:[#allocation6 + $0x98] sm:$0xff]
          %v1148 = vld [vmem:[#allocation6 + $0xa0] sm:$0xff]
          %v1149 = vld [vmem:[#allocation6 + $0xa8] sm:$0xff]
          %v1150 = vld [vmem:[#allocation6 + $0xb0] sm:$0xff]
          %v1151 = vld [vmem:[#allocation6 + $0xb8] sm:$0xff]
          %v1152 = vld [vmem:[#allocation6 + $0xc0] sm:$0xff]
          %v1153 = vld [vmem:[#allocation6 + $0xc8] sm:$0xff]
          %v1154 = vld [vmem:[#allocation6 + $0xd0] sm:$0xff]
          %v1155 = vld [vmem:[#allocation6 + $0xd8] sm:$0xff]
          %v1156 = vld [vmem:[#allocation6 + $0xe0] sm:$0xff]
          %v1157 = vld [vmem:[#allocation6 + $0xe8] sm:$0xff]
          %v1158 = vld [vmem:[#allocation6 + $0xf0] sm:$0xff]
          %v1159 = vld [vmem:[#allocation6 + $0xf8] sm:$0xff]
          %v1160 = vld [vmem:[#allocation6 + $0x100] sm:$0xff]
          %v1161 = vld [vmem:[#allocation6 + $0x108] sm:$0xff]
          %v1162 = vld [vmem:[#allocation6 + $0x110] sm:$0xff]
          %v1163 = vld [vmem:[#allocation6 + $0x118] sm:$0xff]
          %v1164 = vld [vmem:[#allocation6 + $0x120] sm:$0xff]
          %v1165 = vld [vmem:[#allocation6 + $0x128] sm:$0xff]
          %v1166 = vld [vmem:[#allocation6 + $0x130] sm:$0xff]
          %v1167 = vld [vmem:[#allocation6 + $0x138] sm:$0xff]
          %v1168 = vld [vmem:[#allocation6 + $0x140] sm:$0xff]
          %v1169 = vld [vmem:[#allocation6 + $0x148] sm:$0xff]
          %v1170 = vld [vmem:[#allocation6 + $0x150] sm:$0xff]
          %v1171 = vld [vmem:[#allocation6 + $0x158] sm:$0xff]
          %v1172 = vld [vmem:[#allocation6 + $0x160] sm:$0xff]
          %v1173 = vld [vmem:[#allocation6 + $0x168] sm:$0xff]
          %v1174 = vld [vmem:[#allocation6 + $0x170] sm:$0xff]
          %v1175 = vld [vmem:[#allocation6 + $0x178] sm:$0xff]
          %v1176 = vld [vmem:[#allocation6 + $0x180] sm:$0xff]
          %v1177 = vld [vmem:[#allocation6 + $0x188] sm:$0xff]
          %v1178 = vld [vmem:[#allocation6 + $0x190] sm:$0xff]
          %v1179 = vld [vmem:[#allocation6 + $0x198] sm:$0xff]
          %v1180 = vld [vmem:[#allocation6 + $0x1a0] sm:$0xff]
          %v1181 = vld [vmem:[#allocation6 + $0x1a8] sm:$0xff]
          %v1182 = vld [vmem:[#allocation6 + $0x1b0] sm:$0xff]
          %v1183 = vld [vmem:[#allocation6 + $0x1b8] sm:$0xff]
          %v1184 = vld [vmem:[#allocation6 + $0x1c0] sm:$0xff]
          %v1185 = vld [vmem:[#allocation6 + $0x1c8] sm:$0xff]
          %v1186 = vld [vmem:[#allocation6 + $0x1d0] sm:$0xff]
          %v1187 = vld [vmem:[#allocation6 + $0x1d8] sm:$0xff]
          %v1188 = vld [vmem:[#allocation6 + $0x1e0] sm:$0xff]
          %v1189 = vld [vmem:[#allocation6 + $0x1e8] sm:$0xff]
          %v1190 = vld [vmem:[#allocation6 + $0x1f0] sm:$0xff]
          %v1191 = vld [vmem:[#allocation6 + $0x1f8] sm:$0xff]
          %v1192 = vld [vmem:[#allocation6 + $0x200] sm:$0xff]
          %v1193 = vld [vmem:[#allocation6 + $0x208] sm:$0xff]
          %v1194 = vld [vmem:[#allocation6 + $0x210] sm:$0xff]
          %v1195 = vld [vmem:[#allocation6 + $0x218] sm:$0xff]
          %v1196 = vld [vmem:[#allocation6 + $0x220] sm:$0xff]
          %v1197 = vld [vmem:[#allocation6 + $0x228] sm:$0xff]
          %v1198 = vld [vmem:[#allocation6 + $0x230] sm:$0xff]
          %v1199 = vld [vmem:[#allocation6 + $0x238] sm:$0xff]
          %v1200 = vld [vmem:[#allocation6 + $0x240] sm:$0xff]
          %v1201 = vld [vmem:[#allocation6 + $0x248] sm:$0xff]
          %v1202 = vld [vmem:[#allocation6 + $0x250] sm:$0xff]
          %v1203 = vld [vmem:[#allocation6 + $0x258] sm:$0xff]
          %v1204 = vld [vmem:[#allocation6 + $0x260] sm:$0xff]
          %v1205 = vld [vmem:[#allocation6 + $0x268] sm:$0xff]
          %v1206 = vld [vmem:[#allocation6 + $0x270] sm:$0xff]
          %v1207 = vld [vmem:[#allocation6 + $0x278] sm:$0xff]
          %v1208 = vld [vmem:[#allocation6 + $0x280] sm:$0xff]
          %v1209 = vld [vmem:[#allocation6 + $0x288] sm:$0xff]
          %v1210 = vld [vmem:[#allocation6 + $0x290] sm:$0xff]
          %v1211 = vld [vmem:[#allocation6 + $0x298] sm:$0xff]
          %v1212 = vld [vmem:[#allocation6 + $0x2a0] sm:$0xff]
          %v1213 = vld [vmem:[#allocation6 + $0x2a8] sm:$0xff]
          %v1214 = vld [vmem:[#allocation6 + $0x2b0] sm:$0xff]
          %v1215 = vld [vmem:[#allocation6 + $0x2b8] sm:$0xff]
          %v1216 = vld [vmem:[#allocation6 + $0x2c0] sm:$0xff]
          %v1217 = vld [vmem:[#allocation6 + $0x2c8] sm:$0xff]
          %v1218 = vld [vmem:[#allocation6 + $0x2d0] sm:$0xff]
          %v1219 = vld [vmem:[#allocation6 + $0x2d8] sm:$0xff]
          %v1220 = vld [vmem:[#allocation6 + $0x2e0] sm:$0xff]
          %v1221 = vld [vmem:[#allocation6 + $0x2e8] sm:$0xff]
          %v1222 = vld [vmem:[#allocation6 + $0x2f0] sm:$0xff]
          %v1223 = vld [vmem:[#allocation6 + $0x2f8] sm:$0xff]
          %v1224 = vmul.f32 %v1128, 0.001
          %v1225 = vmul.f32 %v1129, 0.001
          %v1226 = vmul.f32 %v1130, 0.001
          %v1227 = vmul.f32 %v1131, 0.001
          %v1228 = vmul.f32 %v1132, 0.001
          %v1229 = vmul.f32 %v1133, 0.001
          %v1230 = vmul.f32 %v1134, 0.001
          %v1231 = vmul.f32 %v1135, 0.001
          %v1232 = vmul.f32 %v1136, 0.001
          %v1233 = vmul.f32 %v1137, 0.001
          %v1234 = vmul.f32 %v1138, 0.001
          %v1235 = vmul.f32 %v1139, 0.001
          %v1236 = vmul.f32 %v1140, 0.001
          %v1237 = vmul.f32 %v1141, 0.001
          %v1238 = vmul.f32 %v1142, 0.001
          %v1239 = vmul.f32 %v1143, 0.001
          %v1240 = vmul.f32 %v1144, 0.001
          %v1241 = vmul.f32 %v1145, 0.001
          %v1242 = vmul.f32 %v1146, 0.001
          %v1243 = vmul.f32 %v1147, 0.001
          %v1244 = vmul.f32 %v1148, 0.001
          %v1245 = vmul.f32 %v1149, 0.001
          %v1246 = vmul.f32 %v1150, 0.001
          %v1247 = vmul.f32 %v1151, 0.001
          %v1248 = vmul.f32 %v1152, 0.001
          %v1249 = vmul.f32 %v1153, 0.001
          %v1250 = vmul.f32 %v1154, 0.001
          %v1251 = vmul.f32 %v1155, 0.001
          %v1252 = vmul.f32 %v1156, 0.001
          %v1253 = vmul.f32 %v1157, 0.001
          %v1254 = vmul.f32 %v1158, 0.001
          %v1255 = vmul.f32 %v1159, 0.001
          %v1256 = vmul.f32 %v1160, 0.001
          %v1257 = vmul.f32 %v1161, 0.001
          %v1258 = vmul.f32 %v1162, 0.001
          %v1259 = vmul.f32 %v1163, 0.001
          %v1260 = vmul.f32 %v1164, 0.001
          %v1261 = vmul.f32 %v1165, 0.001
          %v1262 = vmul.f32 %v1166, 0.001
          %v1263 = vmul.f32 %v1167, 0.001
          %v1264 = vmul.f32 %v1168, 0.001
          %v1265 = vmul.f32 %v1169, 0.001
          %v1266 = vmul.f32 %v1170, 0.001
          %v1267 = vmul.f32 %v1171, 0.001
          %v1268 = vmul.f32 %v1172, 0.001
          %v1269 = vmul.f32 %v1173, 0.001
          %v1270 = vmul.f32 %v1174, 0.001
          %v1271 = vmul.f32 %v1175, 0.001
          %v1272 = vmul.f32 %v1176, 0.001
          %v1273 = vmul.f32 %v1177, 0.001
          %v1274 = vmul.f32 %v1178, 0.001
          %v1275 = vmul.f32 %v1179, 0.001
          %v1276 = vmul.f32 %v1180, 0.001
          %v1277 = vmul.f32 %v1181, 0.001
          %v1278 = vmul.f32 %v1182, 0.001
          %v1279 = vmul.f32 %v1183, 0.001
          %v1280 = vmul.f32 %v1184, 0.001
          %v1281 = vmul.f32 %v1185, 0.001
          %v1282 = vmul.f32 %v1186, 0.001
          %v1283 = vmul.f32 %v1187, 0.001
          %v1284 = vmul.f32 %v1188, 0.001
          %v1285 = vmul.f32 %v1189, 0.001
          %v1286 = vmul.f32 %v1190, 0.001
          %v1287 = vmul.f32 %v1191, 0.001
          %v1288 = vmul.f32 %v1192, 0.001
          %v1289 = vmul.f32 %v1193, 0.001
          %v1290 = vmul.f32 %v1194, 0.001
          %v1291 = vmul.f32 %v1195, 0.001
          %v1292 = vmul.f32 %v1196, 0.001
          %v1293 = vmul.f32 %v1197, 0.001
          %v1294 = vmul.f32 %v1198, 0.001
          %v1295 = vmul.f32 %v1199, 0.001
          %v1296 = vmul.f32 %v1200, 0.001
          %v1297 = vmul.f32 %v1201, 0.001
          %v1298 = vmul.f32 %v1202, 0.001
          %v1299 = vmul.f32 %v1203, 0.001
          %v1300 = vmul.f32 %v1204, 0.001
          %v1301 = vmul.f32 %v1205, 0.001
          %v1302 = vmul.f32 %v1206, 0.001
          %v1303 = vmul.f32 %v1207, 0.001
          %v1304 = vmul.f32 %v1208, 0.001
          %v1305 = vmul.f32 %v1209, 0.001
          %v1306 = vmul.f32 %v1210, 0.001
          %v1307 = vmul.f32 %v1211, 0.001
          %v1308 = vmul.f32 %v1212, 0.001
          %v1309 = vmul.f32 %v1213, 0.001
          %v1310 = vmul.f32 %v1214, 0.001
          %v1311 = vmul.f32 %v1215, 0.001
          %v1312 = vmul.f32 %v1216, 0.001
          %v1313 = vmul.f32 %v1217, 0.001
          %v1314 = vmul.f32 %v1218, 0.001
          %v1315 = vmul.f32 %v1219, 0.001
          %v1316 = vmul.f32 %v1220, 0.001
          %v1317 = vmul.f32 %v1221, 0.001
          %v1318 = vmul.f32 %v1222, 0.001
          %v1319 = vmul.f32 %v1223, 0.001
          %v1320 = vadd.f32 %v1032, %v1224
          %v1321 = vadd.f32 %v1033, %v1225
          %v1322 = vadd.f32 %v1034, %v1226
          %v1323 = vadd.f32 %v1035, %v1227
          %v1324 = vadd.f32 %v1036, %v1228
          %v1325 = vadd.f32 %v1037, %v1229
          %v1326 = vadd.f32 %v1038, %v1230
          %v1327 = vadd.f32 %v1039, %v1231
          %v1328 = vadd.f32 %v1040, %v1232
          %v1329 = vadd.f32 %v1041, %v1233
          %v1330 = vadd.f32 %v1042, %v1234
          %v1331 = vadd.f32 %v1043, %v1235
          %v1332 = vadd.f32 %v1044, %v1236
          %v1333 = vadd.f32 %v1045, %v1237
          %v1334 = vadd.f32 %v1046, %v1238
          %v1335 = vadd.f32 %v1047, %v1239
          %v1336 = vadd.f32 %v1048, %v1240
          %v1337 = vadd.f32 %v1049, %v1241
          %v1338 = vadd.f32 %v1050, %v1242
          %v1339 = vadd.f32 %v1051, %v1243
          %v1340 = vadd.f32 %v1052, %v1244
          %v1341 = vadd.f32 %v1053, %v1245
          %v1342 = vadd.f32 %v1054, %v1246
          %v1343 = vadd.f32 %v1055, %v1247
          %v1344 = vadd.f32 %v1056, %v1248
          %v1345 = vadd.f32 %v1057, %v1249
          %v1346 = vadd.f32 %v1058, %v1250
          %v1347 = vadd.f32 %v1059, %v1251
          %v1348 = vadd.f32 %v1060, %v1252
          %v1349 = vadd.f32 %v1061, %v1253
          %v1350 = vadd.f32 %v1062, %v1254
          %v1351 = vadd.f32 %v1063, %v1255
          %v1352 = vadd.f32 %v1064, %v1256
          %v1353 = vadd.f32 %v1065, %v1257
          %v1354 = vadd.f32 %v1066, %v1258
          %v1355 = vadd.f32 %v1067, %v1259
          %v1356 = vadd.f32 %v1068, %v1260
          %v1357 = vadd.f32 %v1069, %v1261
          %v1358 = vadd.f32 %v1070, %v1262
          %v1359 = vadd.f32 %v1071, %v1263
          %v1360 = vadd.f32 %v1072, %v1264
          %v1361 = vadd.f32 %v1073, %v1265
          %v1362 = vadd.f32 %v1074, %v1266
          %v1363 = vadd.f32 %v1075, %v1267
          %v1364 = vadd.f32 %v1076, %v1268
          %v1365 = vadd.f32 %v1077, %v1269
          %v1366 = vadd.f32 %v1078, %v1270
          %v1367 = vadd.f32 %v1079, %v1271
          %v1368 = vadd.f32 %v1080, %v1272
          %v1369 = vadd.f32 %v1081, %v1273
          %v1370 = vadd.f32 %v1082, %v1274
          %v1371 = vadd.f32 %v1083, %v1275
          %v1372 = vadd.f32 %v1084, %v1276
          %v1373 = vadd.f32 %v1085, %v1277
          %v1374 = vadd.f32 %v1086, %v1278
          %v1375 = vadd.f32 %v1087, %v1279
          %v1376 = vadd.f32 %v1088, %v1280
          %v1377 = vadd.f32 %v1089, %v1281
          %v1378 = vadd.f32 %v1090, %v1282
          %v1379 = vadd.f32 %v1091, %v1283
          %v1380 = vadd.f32 %v1092, %v1284
          %v1381 = vadd.f32 %v1093, %v1285
          %v1382 = vadd.f32 %v1094, %v1286
          %v1383 = vadd.f32 %v1095, %v1287
          %v1384 = vadd.f32 %v1096, %v1288
          %v1385 = vadd.f32 %v1097, %v1289
          %v1386 = vadd.f32 %v1098, %v1290
          %v1387 = vadd.f32 %v1099, %v1291
          %v1388 = vadd.f32 %v1100, %v1292
          %v1389 = vadd.f32 %v1101, %v1293
          %v1390 = vadd.f32 %v1102, %v1294
          %v1391 = vadd.f32 %v1103, %v1295
          %v1392 = vadd.f32 %v1104, %v1296
          %v1393 = vadd.f32 %v1105, %v1297
          %v1394 = vadd.f32 %v1106, %v1298
          %v1395 = vadd.f32 %v1107, %v1299
          %v1396 = vadd.f32 %v1108, %v1300
          %v1397 = vadd.f32 %v1109, %v1301
          %v1398 = vadd.f32 %v1110, %v1302
          %v1399 = vadd.f32 %v1111, %v1303
          %v1400 = vadd.f32 %v1112, %v1304
          %v1401 = vadd.f32 %v1113, %v1305
          %v1402 = vadd.f32 %v1114, %v1306
          %v1403 = vadd.f32 %v1115, %v1307
          %v1404 = vadd.f32 %v1116, %v1308
          %v1405 = vadd.f32 %v1117, %v1309
          %v1406 = vadd.f32 %v1118, %v1310
          %v1407 = vadd.f32 %v1119, %v1311
          %v1408 = vadd.f32 %v1120, %v1312
          %v1409 = vadd.f32 %v1121, %v1313
          %v1410 = vadd.f32 %v1122, %v1314
          %v1411 = vadd.f32 %v1123, %v1315
          %v1412 = vadd.f32 %v1124, %v1316
          %v1413 = vadd.f32 %v1125, %v1317
          %v1414 = vadd.f32 %v1126, %v1318
          %v1415 = vadd.f32 %v1127, %v1319
          %v1416 = vld [vmem:[%s8] sm:$0x1]
          %v1417 = vmul.f32 %v1416, 0.999
          %v1418 = vld [vmem:[%s4] sm:$0x1]
          %v1419 = vmul.f32 %v1418, 0.001
          %v1420 = vadd.f32 %v1417, %v1419
          %v1421 = vld [vmem:[#allocation11] sm:$0xff]
          %v1422 = vld [vmem:[#allocation11 + $0x8] sm:$0xff]
          %v1423 = vld [vmem:[#allocation11 + $0x10] sm:$0xff]
          %v1424 = vld [vmem:[#allocation11 + $0x18] sm:$0xff]
          %v1425 = vld [vmem:[#allocation11 + $0x20] sm:$0xff]
          %v1426 = vld [vmem:[#allocation11 + $0x28] sm:$0xff]
          %v1427 = vld [vmem:[#allocation11 + $0x30] sm:$0xff]
          %v1428 = vld [vmem:[#allocation11 + $0x38] sm:$0xff]
          %v1429 = vld [vmem:[#allocation11 + $0x40] sm:$0xff]
          %v1430 = vld [vmem:[#allocation11 + $0x48] sm:$0xff]
          %v1431 = vld [vmem:[#allocation11 + $0x50] sm:$0xff]
          %v1432 = vld [vmem:[#allocation11 + $0x58] sm:$0xff]
          %v1433 = vld [vmem:[#allocation11 + $0x60] sm:$0xff]
          %v1434 = vld [vmem:[#allocation11 + $0x68] sm:$0xff]
          %v1435 = vld [vmem:[#allocation11 + $0x70] sm:$0xff]
          %v1436 = vld [vmem:[#allocation11 + $0x78] sm:$0xff]
          %v1437 = vmul.f32 %v1421, 0.999
          %v1438 = vmul.f32 %v1422, 0.999
          %v1439 = vmul.f32 %v1423, 0.999
          %v1440 = vmul.f32 %v1424, 0.999
          %v1441 = vmul.f32 %v1425, 0.999
          %v1442 = vmul.f32 %v1426, 0.999
          %v1443 = vmul.f32 %v1427, 0.999
          %v1444 = vmul.f32 %v1428, 0.999
          %v1445 = vmul.f32 %v1429, 0.999
          %v1446 = vmul.f32 %v1430, 0.999
          %v1447 = vmul.f32 %v1431, 0.999
          %v1448 = vmul.f32 %v1432, 0.999
          %v1449 = vmul.f32 %v1433, 0.999
          %v1450 = vmul.f32 %v1434, 0.999
          %v1451 = vmul.f32 %v1435, 0.999
          %v1452 = vmul.f32 %v1436, 0.999
          %v1453 = vld [vmem:[#allocation9] sm:$0xff]
          %v1454 = vld [vmem:[#allocation9 + $0x8] sm:$0xff]
          %v1455 = vld [vmem:[#allocation9 + $0x10] sm:$0xff]
          %v1456 = vld [vmem:[#allocation9 + $0x18] sm:$0xff]
          %v1457 = vld [vmem:[#allocation9 + $0x20] sm:$0xff]
          %v1458 = vld [vmem:[#allocation9 + $0x28] sm:$0xff]
          %v1459 = vld [vmem:[#allocation9 + $0x30] sm:$0xff]
          %v1460 = vld [vmem:[#allocation9 + $0x38] sm:$0xff]
          %v1461 = vld [vmem:[#allocation9 + $0x40] sm:$0xff]
          %v1462 = vld [vmem:[#allocation9 + $0x48] sm:$0xff]
          %v1463 = vld [vmem:[#allocation9 + $0x50] sm:$0xff]
          %v1464 = vld [vmem:[#allocation9 + $0x58] sm:$0xff]
          %v1465 = vld [vmem:[#allocation9 + $0x60] sm:$0xff]
          %v1466 = vld [vmem:[#allocation9 + $0x68] sm:$0xff]
          %v1467 = vld [vmem:[#allocation9 + $0x70] sm:$0xff]
          %v1468 = vld [vmem:[#allocation9 + $0x78] sm:$0xff]
          %v1469 = vmul.f32 %v1453, 0.001
          %v1470 = vmul.f32 %v1454, 0.001
          %v1471 = vmul.f32 %v1455, 0.001
          %v1472 = vmul.f32 %v1456, 0.001
          %v1473 = vmul.f32 %v1457, 0.001
          %v1474 = vmul.f32 %v1458, 0.001
          %v1475 = vmul.f32 %v1459, 0.001
          %v1476 = vmul.f32 %v1460, 0.001
          %v1477 = vmul.f32 %v1461, 0.001
          %v1478 = vmul.f32 %v1462, 0.001
          %v1479 = vmul.f32 %v1463, 0.001
          %v1480 = vmul.f32 %v1464, 0.001
          %v1481 = vmul.f32 %v1465, 0.001
          %v1482 = vmul.f32 %v1466, 0.001
          %v1483 = vmul.f32 %v1467, 0.001
          %v1484 = vmul.f32 %v1468, 0.001
          %v1485 = vadd.f32 %v1437, %v1469
          %v1486 = vadd.f32 %v1438, %v1470
          %v1487 = vadd.f32 %v1439, %v1471
          %v1488 = vadd.f32 %v1440, %v1472
          %v1489 = vadd.f32 %v1441, %v1473
          %v1490 = vadd.f32 %v1442, %v1474
          %v1491 = vadd.f32 %v1443, %v1475
          %v1492 = vadd.f32 %v1444, %v1476
          %v1493 = vadd.f32 %v1445, %v1477
          %v1494 = vadd.f32 %v1446, %v1478
          %v1495 = vadd.f32 %v1447, %v1479
          %v1496 = vadd.f32 %v1448, %v1480
          %v1497 = vadd.f32 %v1449, %v1481
          %v1498 = vadd.f32 %v1450, %v1482
          %v1499 = vadd.f32 %v1451, %v1483
          %v1500 = vadd.f32 %v1452, %v1484
          %v1501 = vld [vmem:[%s10] sm:$0x1]
          %v1502 = vmul.f32 %v1501, 0.999
          %v1503 = vld [vmem:[%s6] sm:$0x1]
          %v1504 = vmul.f32 %v1503, 0.001
          %v1505 = vadd.f32 %v1502, %v1504
          %1506 = vst [vmem:[%s16] sm:$0xff] %v1320
          %1507 = vst [vmem:[%s16 + $0x8] sm:$0xff] %v1321
          %1508 = vst [vmem:[%s16 + $0x10] sm:$0xff] %v1322
          %1509 = vst [vmem:[%s16 + $0x18] sm:$0xff] %v1323
          %1510 = vst [vmem:[%s16 + $0x20] sm:$0xff] %v1324
          %1511 = vst [vmem:[%s16 + $0x28] sm:$0xff] %v1325
          %1512 = vst [vmem:[%s16 + $0x30] sm:$0xff] %v1326
          %1513 = vst [vmem:[%s16 + $0x38] sm:$0xff] %v1327
          %1514 = vst [vmem:[%s16 + $0x40] sm:$0xff] %v1328
          %1515 = vst [vmem:[%s16 + $0x48] sm:$0xff] %v1329
          %1516 = vst [vmem:[%s16 + $0x50] sm:$0xff] %v1330
          %1517 = vst [vmem:[%s16 + $0x58] sm:$0xff] %v1331
          %1518 = vst [vmem:[%s16 + $0x60] sm:$0xff] %v1332
          %1519 = vst [vmem:[%s16 + $0x68] sm:$0xff] %v1333
          %1520 = vst [vmem:[%s16 + $0x70] sm:$0xff] %v1334
          %1521 = vst [vmem:[%s16 + $0x78] sm:$0xff] %v1335
          %1522 = vst [vmem:[%s16 + $0x80] sm:$0xff] %v1336
          %1523 = vst [vmem:[%s16 + $0x88] sm:$0xff] %v1337
          %1524 = vst [vmem:[%s16 + $0x90] sm:$0xff] %v1338
          %1525 = vst [vmem:[%s16 + $0x98] sm:$0xff] %v1339
          %1526 = vst [vmem:[%s16 + $0xa0] sm:$0xff] %v1340
          %1527 = vst [vmem:[%s16 + $0xa8] sm:$0xff] %v1341
          %1528 = vst [vmem:[%s16 + $0xb0] sm:$0xff] %v1342
          %1529 = vst [vmem:[%s16 + $0xb8] sm:$0xff] %v1343
          %1530 = vst [vmem:[%s16 + $0xc0] sm:$0xff] %v1344
          %1531 = vst [vmem:[%s16 + $0xc8] sm:$0xff] %v1345
          %1532 = vst [vmem:[%s16 + $0xd0] sm:$0xff] %v1346
          %1533 = vst [vmem:[%s16 + $0xd8] sm:$0xff] %v1347
          %1534 = vst [vmem:[%s16 + $0xe0] sm:$0xff] %v1348
          %1535 = vst [vmem:[%s16 + $0xe8] sm:$0xff] %v1349
          %1536 = vst [vmem:[%s16 + $0xf0] sm:$0xff] %v1350
          %1537 = vst [vmem:[%s16 + $0xf8] sm:$0xff] %v1351
          %1538 = vst [vmem:[%s16 + $0x100] sm:$0xff] %v1352
          %1539 = vst [vmem:[%s16 + $0x108] sm:$0xff] %v1353
          %1540 = vst [vmem:[%s16 + $0x110] sm:$0xff] %v1354
          %1541 = vst [vmem:[%s16 + $0x118] sm:$0xff] %v1355
          %1542 = vst [vmem:[%s16 + $0x120] sm:$0xff] %v1356
          %1543 = vst [vmem:[%s16 + $0x128] sm:$0xff] %v1357
          %1544 = vst [vmem:[%s16 + $0x130] sm:$0xff] %v1358
          %1545 = vst [vmem:[%s16 + $0x138] sm:$0xff] %v1359
          %1546 = vst [vmem:[%s16 + $0x140] sm:$0xff] %v1360
          %1547 = vst [vmem:[%s16 + $0x148] sm:$0xff] %v1361
          %1548 = vst [vmem:[%s16 + $0x150] sm:$0xff] %v1362
          %1549 = vst [vmem:[%s16 + $0x158] sm:$0xff] %v1363
          %1550 = vst [vmem:[%s16 + $0x160] sm:$0xff] %v1364
          %1551 = vst [vmem:[%s16 + $0x168] sm:$0xff] %v1365
          %1552 = vst [vmem:[%s16 + $0x170] sm:$0xff] %v1366
          %1553 = vst [vmem:[%s16 + $0x178] sm:$0xff] %v1367
          %1554 = vst [vmem:[%s16 + $0x180] sm:$0xff] %v1368
          %1555 = vst [vmem:[%s16 + $0x188] sm:$0xff] %v1369
          %1556 = vst [vmem:[%s16 + $0x190] sm:$0xff] %v1370
          %1557 = vst [vmem:[%s16 + $0x198] sm:$0xff] %v1371
          %1558 = vst [vmem:[%s16 + $0x1a0] sm:$0xff] %v1372
          %1559 = vst [vmem:[%s16 + $0x1a8] sm:$0xff] %v1373
          %1560 = vst [vmem:[%s16 + $0x1b0] sm:$0xff] %v1374
          %1561 = vst [vmem:[%s16 + $0x1b8] sm:$0xff] %v1375
          %1562 = vst [vmem:[%s16 + $0x1c0] sm:$0xff] %v1376
          %1563 = vst [vmem:[%s16 + $0x1c8] sm:$0xff] %v1377
          %1564 = vst [vmem:[%s16 + $0x1d0] sm:$0xff] %v1378
          %1565 = vst [vmem:[%s16 + $0x1d8] sm:$0xff] %v1379
          %1566 = vst [vmem:[%s16 + $0x1e0] sm:$0xff] %v1380
          %1567 = vst [vmem:[%s16 + $0x1e8] sm:$0xff] %v1381
          %1568 = vst [vmem:[%s16 + $0x1f0] sm:$0xff] %v1382
          %1569 = vst [vmem:[%s16 + $0x1f8] sm:$0xff] %v1383
          %1570 = vst [vmem:[%s16 + $0x200] sm:$0xff] %v1384
          %1571 = vst [vmem:[%s16 + $0x208] sm:$0xff] %v1385
          %1572 = vst [vmem:[%s16 + $0x210] sm:$0xff] %v1386
          %1573 = vst [vmem:[%s16 + $0x218] sm:$0xff] %v1387
          %1574 = vst [vmem:[%s16 + $0x220] sm:$0xff] %v1388
          %1575 = vst [vmem:[%s16 + $0x228] sm:$0xff] %v1389
          %1576 = vst [vmem:[%s16 + $0x230] sm:$0xff] %v1390
          %1577 = vst [vmem:[%s16 + $0x238] sm:$0xff] %v1391
          %1578 = vst [vmem:[%s16 + $0x240] sm:$0xff] %v1392
          %1579 = vst [vmem:[%s16 + $0x248] sm:$0xff] %v1393
          %1580 = vst [vmem:[%s16 + $0x250] sm:$0xff] %v1394
          %1581 = vst [vmem:[%s16 + $0x258] sm:$0xff] %v1395
          %1582 = vst [vmem:[%s16 + $0x260] sm:$0xff] %v1396
          %1583 = vst [vmem:[%s16 + $0x268] sm:$0xff] %v1397
          %1584 = vst [vmem:[%s16 + $0x270] sm:$0xff] %v1398
          %1585 = vst [vmem:[%s16 + $0x278] sm:$0xff] %v1399
          %1586 = vst [vmem:[%s16 + $0x280] sm:$0xff] %v1400
          %1587 = vst [vmem:[%s16 + $0x288] sm:$0xff] %v1401
          %1588 = vst [vmem:[%s16 + $0x290] sm:$0xff] %v1402
          %1589 = vst [vmem:[%s16 + $0x298] sm:$0xff] %v1403
          %1590 = vst [vmem:[%s16 + $0x2a0] sm:$0xff] %v1404
          %1591 = vst [vmem:[%s16 + $0x2a8] sm:$0xff] %v1405
          %1592 = vst [vmem:[%s16 + $0x2b0] sm:$0xff] %v1406
          %1593 = vst [vmem:[%s16 + $0x2b8] sm:$0xff] %v1407
          %1594 = vst [vmem:[%s16 + $0x2c0] sm:$0xff] %v1408
          %1595 = vst [vmem:[%s16 + $0x2c8] sm:$0xff] %v1409
          %1596 = vst [vmem:[%s16 + $0x2d0] sm:$0xff] %v1410
          %1597 = vst [vmem:[%s16 + $0x2d8] sm:$0xff] %v1411
          %1598 = vst [vmem:[%s16 + $0x2e0] sm:$0xff] %v1412
          %1599 = vst [vmem:[%s16 + $0x2e8] sm:$0xff] %v1413
          %1600 = vst [vmem:[%s16 + $0x2f0] sm:$0xff] %v1414
          %1601 = vst [vmem:[%s16 + $0x2f8] sm:$0xff] %v1415
          %1602 = vst [vmem:[%s17] sm:$0x1] %v1420
          %1603 = vst [vmem:[#allocation16] sm:$0xff] %v1485
          %1604 = vst [vmem:[#allocation16 + $0x8] sm:$0xff] %v1486
          %1605 = vst [vmem:[#allocation16 + $0x10] sm:$0xff] %v1487
          %1606 = vst [vmem:[#allocation16 + $0x18] sm:$0xff] %v1488
          %1607 = vst [vmem:[#allocation16 + $0x20] sm:$0xff] %v1489
          %1608 = vst [vmem:[#allocation16 + $0x28] sm:$0xff] %v1490
          %1609 = vst [vmem:[#allocation16 + $0x30] sm:$0xff] %v1491
          %1610 = vst [vmem:[#allocation16 + $0x38] sm:$0xff] %v1492
          %1611 = vst [vmem:[#allocation16 + $0x40] sm:$0xff] %v1493
          %1612 = vst [vmem:[#allocation16 + $0x48] sm:$0xff] %v1494
          %1613 = vst [vmem:[#allocation16 + $0x50] sm:$0xff] %v1495
          %1614 = vst [vmem:[#allocation16 + $0x58] sm:$0xff] %v1496
          %1615 = vst [vmem:[#allocation16 + $0x60] sm:$0xff] %v1497
          %1616 = vst [vmem:[#allocation16 + $0x68] sm:$0xff] %v1498
          %1617 = vst [vmem:[#allocation16 + $0x70] sm:$0xff] %v1499
          %1618 = vst [vmem:[#allocation16 + $0x78] sm:$0xff] %v1500
          %1619 = vst [vmem:[%s19] sm:$0x1] %v1505
          %v1620 = vld [vmem:[%s2] sm:$0xff]
          %v1621 = vld [vmem:[%s2 + $0x8] sm:$0xff]
          %v1622 = vld [vmem:[%s2 + $0x10] sm:$0xff]
          %v1623 = vld [vmem:[%s2 + $0x18] sm:$0xff]
          %v1624 = vld [vmem:[%s2 + $0x20] sm:$0xff]
          %v1625 = vld [vmem:[%s2 + $0x28] sm:$0xff]
          %v1626 = vld [vmem:[%s2 + $0x30] sm:$0xff]
          %v1627 = vld [vmem:[%s2 + $0x38] sm:$0xff]
          %v1628 = vld [vmem:[%s2 + $0x40] sm:$0xff]
          %v1629 = vld [vmem:[%s2 + $0x48] sm:$0xff]
          %v1630 = vld [vmem:[%s2 + $0x50] sm:$0xff]
          %v1631 = vld [vmem:[%s2 + $0x58] sm:$0xff]
          %v1632 = vpack.c.bf16 %v1626, %v1620
          %v1633 = vpack.c.bf16 %v1627, %v1621
          %v1634 = vpack.c.bf16 %v1628, %v1622
          %v1635 = vpack.c.bf16 %v1629, %v1623
          %v1636 = vpack.c.bf16 %v1630, %v1624
          %v1637 = vpack.c.bf16 %v1631, %v1625
          %v1638 = vpack.c.bf16 %v1321, %v1320
          %v1639 = vpack.c.bf16 %v1323, %v1322
          %v1640 = vpack.c.bf16 %v1325, %v1324
          %v1641 = vpack.c.bf16 %v1327, %v1326
          %v1642 = vpack.c.bf16 %v1329, %v1328
          %v1643 = vpack.c.bf16 %v1331, %v1330
          %v1644 = vpack.c.bf16 %v1333, %v1332
          %v1645 = vpack.c.bf16 %v1335, %v1334
          %v1646 = vpack.c.bf16 %v1337, %v1336
          %v1647 = vpack.c.bf16 %v1339, %v1338
          %v1648 = vpack.c.bf16 %v1341, %v1340
          %v1649 = vpack.c.bf16 %v1343, %v1342
          %v1650 = vpack.c.bf16 %v1345, %v1344
          %v1651 = vpack.c.bf16 %v1347, %v1346
          %v1652 = vpack.c.bf16 %v1349, %v1348
          %v1653 = vpack.c.bf16 %v1351, %v1350
          %v1654 = vpack.c.bf16 %v1353, %v1352
          %v1655 = vpack.c.bf16 %v1355, %v1354
          %v1656 = vpack.c.bf16 %v1357, %v1356
          %v1657 = vpack.c.bf16 %v1359, %v1358
          %v1658 = vpack.c.bf16 %v1361, %v1360
          %v1659 = vpack.c.bf16 %v1363, %v1362
          %v1660 = vpack.c.bf16 %v1365, %v1364
          %v1661 = vpack.c.bf16 %v1367, %v1366
          %v1662 = vpack.c.bf16 %v1369, %v1368
          %v1663 = vpack.c.bf16 %v1371, %v1370
          %v1664 = vpack.c.bf16 %v1373, %v1372
          %v1665 = vpack.c.bf16 %v1375, %v1374
          %v1666 = vpack.c.bf16 %v1377, %v1376
          %v1667 = vpack.c.bf16 %v1379, %v1378
          %v1668 = vpack.c.bf16 %v1381, %v1380
          %v1669 = vpack.c.bf16 %v1383, %v1382
          %v1670 = vpack.c.bf16 %v1385, %v1384
          %v1671 = vpack.c.bf16 %v1387, %v1386
          %v1672 = vpack.c.bf16 %v1389, %v1388
          %v1673 = vpack.c.bf16 %v1391, %v1390
          %v1674 = vpack.c.bf16 %v1393, %v1392
          %v1675 = vpack.c.bf16 %v1395, %v1394
          %v1676 = vpack.c.bf16 %v1397, %v1396
          %v1677 = vpack.c.bf16 %v1399, %v1398
          %v1678 = vpack.c.bf16 %v1401, %v1400
          %v1679 = vpack.c.bf16 %v1403, %v1402
          %v1680 = vpack.c.bf16 %v1405, %v1404
          %v1681 = vpack.c.bf16 %v1407, %v1406
          %v1682 = vpack.c.bf16 %v1409, %v1408
          %v1683 = vpack.c.bf16 %v1411, %v1410
          %v1684 = vpack.c.bf16 %v1413, %v1412
          %v1685 = vpack.c.bf16 %v1415, %v1414
          %v1687 = vperm.slane %v1420, 0
          %1689 = vmatpush.bf16.msra.mxu0 %v1645
          %1690 = vmatpush.bf16.msra.mxu0 %v1644
          %1691 = vmatpush.bf16.msra.mxu0 %v1643
          %1692 = vmatpush.bf16.msra.mxu0 %v1642
          %1693 = vmatpush.bf16.msra.mxu0 %v1641
          %1694 = vmatpush.bf16.msra.mxu0 %v1640
          %1695 = vmatpush.bf16.msra.mxu0 %v1639
          %1696 = vmatpush.bf16.msra.mxu0 %v1638
          %1697 = vmatmul.bf16.gmra.mxu0 %v1632
          %v1698 = vpop.f32.mrf.mxu0
          %v1699 = vadd.f32 %v1687, %v1698
          %v1700 = vpop.f32.mrf.mxu0
          %v1701 = vadd.f32 %v1687, %v1700
          %1702 = vdwg.mxu0
          %1703 = vmatpush.bf16.msra.mxu0 %v1653
          %1704 = vmatpush.bf16.msra.mxu0 %v1652
          %1705 = vmatpush.bf16.msra.mxu0 %v1651
          %1706 = vmatpush.bf16.msra.mxu0 %v1650
          %1707 = vmatpush.bf16.msra.mxu0 %v1649
          %1708 = vmatpush.bf16.msra.mxu0 %v1648
          %1709 = vmatpush.bf16.msra.mxu0 %v1647
          %1710 = vmatpush.bf16.msra.mxu0 %v1646
          %1711 = vmatmul.bf16.gmra.mxu0 %v1633
          %v1712 = vpop.f32.mrf.mxu0
          %v1713 = vadd.f32 %v1699, %v1712
          %v1714 = vpop.f32.mrf.mxu0
          %v1715 = vadd.f32 %v1701, %v1714
          %1716 = vdwg.mxu0
          %1717 = vmatpush.bf16.msra.mxu0 %v1661
          %1718 = vmatpush.bf16.msra.mxu0 %v1660
          %1719 = vmatpush.bf16.msra.mxu0 %v1659
          %1720 = vmatpush.bf16.msra.mxu0 %v1658
          %1721 = vmatpush.bf16.msra.mxu0 %v1657
          %1722 = vmatpush.bf16.msra.mxu0 %v1656
          %1723 = vmatpush.bf16.msra.mxu0 %v1655
          %1724 = vmatpush.bf16.msra.mxu0 %v1654
          %1725 = vmatmul.bf16.gmra.mxu0 %v1634
          %v1726 = vpop.f32.mrf.mxu0
          %v1727 = vadd.f32 %v1713, %v1726
          %v1728 = vpop.f32.mrf.mxu0
          %v1729 = vadd.f32 %v1715, %v1728
          %1730 = vdwg.mxu0
          %1731 = vmatpush.bf16.msra.mxu0 %v1669
          %1732 = vmatpush.bf16.msra.mxu0 %v1668
          %1733 = vmatpush.bf16.msra.mxu0 %v1667
          %1734 = vmatpush.bf16.msra.mxu0 %v1666
          %1735 = vmatpush.bf16.msra.mxu0 %v1665
          %1736 = vmatpush.bf16.msra.mxu0 %v1664
          %1737 = vmatpush.bf16.msra.mxu0 %v1663
          %1738 = vmatpush.bf16.msra.mxu0 %v1662
          %1739 = vmatmul.bf16.gmra.mxu0 %v1635
          %v1740 = vpop.f32.mrf.mxu0
          %v1741 = vadd.f32 %v1727, %v1740
          %v1742 = vpop.f32.mrf.mxu0
          %v1743 = vadd.f32 %v1729, %v1742
          %1744 = vdwg.mxu0
          %1745 = vmatpush.bf16.msra.mxu0 %v1677
          %1746 = vmatpush.bf16.msra.mxu0 %v1676
          %1747 = vmatpush.bf16.msra.mxu0 %v1675
          %1748 = vmatpush.bf16.msra.mxu0 %v1674
          %1749 = vmatpush.bf16.msra.mxu0 %v1673
          %1750 = vmatpush.bf16.msra.mxu0 %v1672
          %1751 = vmatpush.bf16.msra.mxu0 %v1671
          %1752 = vmatpush.bf16.msra.mxu0 %v1670
          %1753 = vmatmul.bf16.gmra.mxu0 %v1636
          %v1754 = vpop.f32.mrf.mxu0
          %v1755 = vadd.f32 %v1741, %v1754
          %v1756 = vpop.f32.mrf.mxu0
          %v1757 = vadd.f32 %v1743, %v1756
          %1758 = vdwg.mxu0
          %1759 = vmatpush.bf16.msra.mxu0 %v1685
          %1760 = vmatpush.bf16.msra.mxu0 %v1684
          %1761 = vmatpush.bf16.msra.mxu0 %v1683
          %1762 = vmatpush.bf16.msra.mxu0 %v1682
          %1763 = vmatpush.bf16.msra.mxu0 %v1681
          %1764 = vmatpush.bf16.msra.mxu0 %v1680
          %1765 = vmatpush.bf16.msra.mxu0 %v1679
          %1766 = vmatpush.bf16.msra.mxu0 %v1678
          %1767 = vmatmul.bf16.gmra.mxu0 %v1637
          %v1768 = vpop.f32.mrf.mxu0
          %v1769 = vadd.f32 %v1755, %v1768
          %v1770 = vpop.f32.mrf.mxu0
          %v1771 = vadd.f32 %v1757, %v1770
          %1772 = vdwg.mxu0
          %v1773 = vmax.f32 %v1769, 0.0
          %v1774 = vmax.f32 %v1771, 0.0
          %v1775 = vpack.c.bf16 %v1774, %v1773
          %v1776 = vpack.c.bf16 %v1486, %v1485
          %v1777 = vpack.c.bf16 %v1488, %v1487
          %v1778 = vpack.c.bf16 %v1490, %v1489
          %v1779 = vpack.c.bf16 %v1492, %v1491
          %v1780 = vpack.c.bf16 %v1494, %v1493
          %v1781 = vpack.c.bf16 %v1496, %v1495
          %v1782 = vpack.c.bf16 %v1498, %v1497
          %v1783 = vpack.c.bf16 %v1500, %v1499
          %v1785 = vperm.slane %v1505, 0
          %1787 = vmatpush.bf16.msra.mxu0 %v1783
          %1788 = vmatpush.bf16.msra.mxu0 %v1782
          %1789 = vmatpush.bf16.msra.mxu0 %v1781
          %1790 = vmatpush.bf16.msra.mxu0 %v1780
          %1791 = vmatpush.bf16.msra.mxu0 %v1779
          %1792 = vmatpush.bf16.msra.mxu0 %v1778
          %1793 = vmatpush.bf16.msra.mxu0 %v1777
          %1794 = vmatpush.bf16.msra.mxu0 %v1776
          %1795 = vmatmul.bf16.gmra.mxu0 %v1775
          %v1796 = vpop.f32.mrf.mxu0
          %v1797 = vadd.f32 %v1785, %v1796
          %v1798 = vpop.f32.mrf.mxu0
          %v1799 = vadd.f32 %v1785, %v1798
          %1800 = vdwg.mxu0
          %v1801 = vmul.f32 %v928, %v928
          %v1802 = vmul.f32 %v930, %v930
          %1803 = vadd.xlane.f32.xlu0 %v1801
          %v1804 = vpop.xlane.xlu0 %1803
          %1805 = vadd.xlane.f32.xlu0 %v1802
          %v1806 = vpop.xlane.xlu0 %1805
          %v1807 = vmax.f32 %v1804, 1e-24
          %v1808 = vmax.f32 %v1806, 1e-24
          %v1809 = vrsqrt.pop %v1807
          %v1810 = vmul.f32 %v1809, %v1807
          %v1811 = vmul.f32 %v1810, %v1809
          %v1812 = vmul.f32 0.5, %v1811
          %v1813 = vsub.f32 1.5, %v1812
          %v1814 = vmul.f32 %v1809, %v1813
          %vm1815 = vweird.f32 %v1807
          %vm1816 = vweird.f32 %v1809
          %vm1817 = vmor %vm1815, %vm1816
          %v1818 = vsel %vm1817, %v1809, %v1814
          %v1819 = vrsqrt.pop %v1808
          %v1820 = vmul.f32 %v1819, %v1808
          %v1821 = vmul.f32 %v1820, %v1819
          %v1822 = vmul.f32 0.5, %v1821
          %v1823 = vsub.f32 1.5, %v1822
          %v1824 = vmul.f32 %v1819, %v1823
          %vm1825 = vweird.f32 %v1808
          %vm1826 = vweird.f32 %v1819
          %vm1827 = vmor %vm1825, %vm1826
          %v1828 = vsel %vm1827, %v1819, %v1824
          %v1829 = vmul.f32 %v928, %v1818
          %v1830 = vmul.f32 %v930, %v1828
          %v1831 = vmul.f32 %v1797, %v1797
          %v1832 = vmul.f32 %v1799, %v1799
          %1833 = vadd.xlane.f32.xlu0 %v1831
          %v1834 = vpop.xlane.xlu0 %1833
          %1835 = vadd.xlane.f32.xlu0 %v1832
          %v1836 = vpop.xlane.xlu0 %1835
          %v1837 = vmax.f32 %v1834, 1e-24
          %v1838 = vmax.f32 %v1836, 1e-24
          %v1839 = vrsqrt.pop %v1837
          %v1840 = vmul.f32 %v1839, %v1837
          %v1841 = vmul.f32 %v1840, %v1839
          %v1842 = vmul.f32 0.5, %v1841
          %v1843 = vsub.f32 1.5, %v1842
          %v1844 = vmul.f32 %v1839, %v1843
          %vm1845 = vweird.f32 %v1837
          %vm1846 = vweird.f32 %v1839
          %vm1847 = vmor %vm1845, %vm1846
          %v1848 = vsel %vm1847, %v1839, %v1844
          %v1849 = vrsqrt.pop %v1838
          %v1850 = vmul.f32 %v1849, %v1838
          %v1851 = vmul.f32 %v1850, %v1849
          %v1852 = vmul.f32 0.5, %v1851
          %v1853 = vsub.f32 1.5, %v1852
          %v1854 = vmul.f32 %v1849, %v1853
          %vm1855 = vweird.f32 %v1838
          %vm1856 = vweird.f32 %v1849
          %vm1857 = vmor %vm1855, %vm1856
          %v1858 = vsel %vm1857, %v1849, %v1854
          %v1859 = vmul.f32 %v1797, %v1848
          %v1860 = vmul.f32 %v1799, %v1858
          %v1861 = vmul.f32 %v1829, %v1859
          %v1862 = vmul.f32 %v1830, %v1860
          %1863 = vadd.xlane.f32.xlu0 %v1861
          %v1864 = vpop.xlane.xlu0 %1863
          %1865 = vadd.xlane.f32.xlu0 %v1862
          %v1866 = vpop.xlane.xlu0 %1865
          %v1867 = vmul.f32 %v1864, 14.285714
          %v1868 = vmul.f32 %v1866, 14.285714
          %vm1869 = vcmask 7168
          %1870 = vst.msk [vmem:[%s14] sm:$0xff] %vm1869, %v1867
          %1871 = vst.msk [vmem:[%s14 + $0x8] sm:$0xff] %vm1869, %v1868
          %v1872 = vpack.c.bf16 %v1829, %v1829
          %v1873 = vpack.c.bf16 %v1830, %v1830
          %1874 = vst [vmem:[#allocation2] sm:$0xf] %v1872
          %1875 = vst [vmem:[#allocation2 + $0x4] sm:$0xf] %v1873
          %v1876 = vpack.c.bf16 %v1859, %v1859
          %v1877 = vpack.c.bf16 %v1860, %v1860
          %1878 = vst [vmem:[#allocation3] sm:$0xf] %v1876
          %1879 = vst [vmem:[#allocation3 + $0x4] sm:$0xf] %v1877
        $region84: #{moco_forward.1} parent=67 // pred_fallthru
          _
        %v1880 = vld [vmem:[#allocation2] sm:$0xf]
        %v1881 = vld [vmem:[#allocation2 + $0x4] sm:$0xf]
        %v1882 = vld [vmem:[%s631] sm:$0xf]
        %v1883 = vld [vmem:[%s631 + $0x4] sm:$0xf]
        %v1884 = vld [vmem:[%s631 + $0x8] sm:$0xf]
        %v1885 = vld [vmem:[%s631 + $0xc] sm:$0xf]
        %v1886 = vld [vmem:[%s631 + $0x10] sm:$0xf]
        %v1887 = vld [vmem:[%s631 + $0x14] sm:$0xf]
        %v1888 = vld [vmem:[%s631 + $0x18] sm:$0xf]
        %v1889 = vld [vmem:[%s631 + $0x1c] sm:$0xf]
        %v1890 = vld [vmem:[%s631 + $0x20] sm:$0xf]
        %v1891 = vld [vmem:[%s631 + $0x24] sm:$0xf]
        %v1892 = vld [vmem:[%s631 + $0x28] sm:$0xf]
        %v1893 = vld [vmem:[%s631 + $0x2c] sm:$0xf]
        %v1894 = vld [vmem:[%s631 + $0x30] sm:$0xf]
        %v1895 = vld [vmem:[%s631 + $0x34] sm:$0xf]
        %v1896 = vld [vmem:[%s631 + $0x38] sm:$0xf]
        %v1897 = vld [vmem:[%s631 + $0x3c] sm:$0xf]
        %v1900 = vunpack.c.l.b16 %v1880
        %v1901 = vunpack.c.l.b16 %v1881
        %v1902 = vpack.c.b16 %v1901, %v1900
        %v1920 = vunpack.c.l.b16 %v1882
        %v1921 = vunpack.c.l.b16 %v1883
        %v1922 = vunpack.c.l.b16 %v1884
        %v1923 = vunpack.c.l.b16 %v1885
        %v1924 = vunpack.c.l.b16 %v1886
        %v1925 = vunpack.c.l.b16 %v1887
        %v1926 = vunpack.c.l.b16 %v1888
        %v1927 = vunpack.c.l.b16 %v1889
        %v1928 = vunpack.c.l.b16 %v1890
        %v1929 = vunpack.c.l.b16 %v1891
        %v1930 = vunpack.c.l.b16 %v1892
        %v1931 = vunpack.c.l.b16 %v1893
        %v1932 = vunpack.c.l.b16 %v1894
        %v1933 = vunpack.c.l.b16 %v1895
        %v1934 = vunpack.c.l.b16 %v1896
        %v1935 = vunpack.c.l.b16 %v1897
        %v1936 = vpack.c.b16 %v1921, %v1920
        %v1937 = vpack.c.b16 %v1923, %v1922
        %v1938 = vpack.c.b16 %v1925, %v1924
        %v1939 = vpack.c.b16 %v1927, %v1926
        %v1940 = vpack.c.b16 %v1929, %v1928
        %v1941 = vpack.c.b16 %v1931, %v1930
        %v1942 = vpack.c.b16 %v1933, %v1932
        %v1943 = vpack.c.b16 %v1935, %v1934
        %1952 = vmatpush.bf16.xpose.msra.mxu0 %v1943
        %1953 = vmatpush.bf16.xpose.msra.mxu0 %v1942
        %1954 = vmatpush.bf16.xpose.msra.mxu0 %v1941
        %1955 = vmatpush.bf16.xpose.msra.mxu0 %v1940
        %1956 = vmatpush.bf16.xpose.msra.mxu0 %v1939
        %1957 = vmatpush.bf16.xpose.msra.mxu0 %v1938
        %1958 = vmatpush.bf16.xpose.msra.mxu0 %v1937
        %1959 = vmatpush.bf16.xpose.msra.mxu0 %v1936
        %1960 = vmatmul.bf16.gmra.mxu0 %v1902
        %v1961 = vpop.f32.mrf.mxu0
        %v1962 = vadd.f32 0.0, %v1961
        %v1963 = vpop.f32.mrf.mxu0
        %v1964 = vadd.f32 0.0, %v1963
        %1965 = vdwg.mxu0
        %v1966 = vmul.f32 %v1962, 14.285714
        %v1967 = vmul.f32 %v1964, 14.285714
        %1968 = vst [vmem:[%s618] sm:$0xff] %v1966
        %1969 = vst [vmem:[%s618 + $0x8] sm:$0xff] %v1967
        %p1970 = scmp.eq.s32.totalorder %s37, 2
        // Predicated region
        $region85: #{moco_forward.1} parent=67 // pred_check
          %p1971 = pneg %p1970
        $region86: #{moco_forward.1} parent=67 // pred_check_branch
          %1973 = sbr.rel (%p1971) target = $region88
        $region87: #{moco_forward.1} parent=67 // pred_region
          %s1974 = sld [smem:[#allocation5]]
          %s1975 = sshra.s32 %s1974, 3
          %s1976 = sand.u32 %s1974, 7
          %s1977 = smul.addr %s1975, 4
          %s1978 = scalar_lea.vmem %s20, %s1977
          // Predicated region
          $region89: #{moco_forward.1} parent=87 // pred_check
            _
          $region90: #{moco_forward.1} parent=87 // pred_check_branch
            %1980 = sbr.rel (0) target = $region92
          $region91: #{moco_forward.1} parent=87 // pred_region
            // Predicated region
            $region104: #{moco_forward.1} parent=91 // pred_check
              _
            $region105: #{moco_forward.1} parent=91 // pred_check_branch
              %1996 = sbr.rel (0) target = $region107
            $region106: #{moco_forward.1} parent=91 // pred_region
              loop: start=0, step=1, limit=1
              $region108: #{moco_forward.1} parent=106 // loop_pre_header
                _
              $region109: #{moco_forward.1} parent=106 // loop_header
                %s1998 = sphi 0, %s2002
                %p1999 = scmp.ge.s32.totalorder %s1998, 1
                %s2003 = sphi [#allocation3], [#allocation3]
                %s2004 = sphi %s1978, %s1978
              $region110: #{moco_forward.1} parent=106 // loop_header_branch
                %2001 = sbr.rel (%p1999) target = $region114
              $region111: #{moco_forward.1} parent=106 // loop_body
                %v2005 = vld [vmem:[%s2003] sm:$0xff]
                %2006 = vst [vmem:[%s2004] sm:$0xff] %v2005
              $region112: #{moco_forward.1} parent=106 // loop_footer
                %s2002 = sadd.s32 1, %s1998
              $region113: #{moco_forward.1} parent=106 // loop_footer_branch
                %1997 = sbr.rel target = $region109
              $region114: #{moco_forward.1} parent=106 // loop_exit
                _
            $region107: #{moco_forward.1} parent=91 // pred_fallthru
              _
            // Predicated region
            $region115: #{moco_forward.1} parent=91 // pred_check
              _
            $region116: #{moco_forward.1} parent=91 // pred_check_branch
              %2008 = sbr.rel target = $region118
            $region117: #{moco_forward.1} parent=91 // pred_region
              _
            $region118: #{moco_forward.1} parent=91 // pred_fallthru
              _
          $region92: #{moco_forward.1} parent=87 // pred_fallthru
            _
          // Predicated region
          $region93: #{moco_forward.1} parent=87 // pred_check
            _
          $region94: #{moco_forward.1} parent=87 // pred_check_branch
            %1982 = sbr.rel target = $region96
          $region95: #{moco_forward.1} parent=87 // pred_region
            %s1984 = ssub.s32 256, 1
            loop: start=0, step=1, limit=1
            $region97: #{moco_forward.1} parent=95 // loop_pre_header
              _
            $region98: #{moco_forward.1} parent=95 // loop_header
              %s1986 = sphi 0, %s1990
              %p1987 = scmp.ge.s32.totalorder %s1986, 1
              %s1991 = sphi [#allocation3], [#allocation3]
              %s1992 = sphi %s1978, %s1978
            $region99: #{moco_forward.1} parent=95 // loop_header_branch
              %1989 = sbr.rel (%p1987) target = $region103
            $region100: #{moco_forward.1} parent=95 // loop_body
              %v1993 = vld [vmem:[%s1991] sm:%s1984]
              %1994 = vst [vmem:[%s1992] sm:%s1984] %v1993
            $region101: #{moco_forward.1} parent=95 // loop_footer
              %s1990 = sadd.s32 1, %s1986
            $region102: #{moco_forward.1} parent=95 // loop_footer_branch
              %1985 = sbr.rel target = $region98
            $region103: #{moco_forward.1} parent=95 // loop_exit
              _
          $region96: #{moco_forward.1} parent=87 // pred_fallthru
            _
          // Predicated region
          $region119: #{moco_forward.1} parent=87 // pred_check
            _
          $region120: #{moco_forward.1} parent=87 // pred_check_branch
            %2011 = sbr.rel (0) target = $region122
          $region121: #{moco_forward.1} parent=87 // pred_region
            %2012 = vsyncadd [#allocation4], 128
          $region122: #{moco_forward.1} parent=87 // pred_fallthru
            _
          %s2013 = smul.u32 4, 2
          %s2014 = smul.u32 %s2013, 1
          %s2015 = sshll.u32 %s2014, 4
          %2016 = dma.done [#allocation4], %s2015
        $region88: #{moco_forward.1} parent=67 // pred_fallthru
          _
        %s2017 = sand.u32 %s365, 1
        %s2018 = sand.u32 %s365, 1
        %s2019 = smul.addr %s2018, 16
        %s2020 = scalar_lea.vmem [#allocation15], %s2019
        // Predicated region
        $region123: #{moco_forward.1} parent=67 // pred_check
          %p2021 = pneg %p307
        $region124: #{moco_forward.1} parent=67 // pred_check_branch
          %2023 = sbr.rel (%p2021) target = $region126
        $region125: #{moco_forward.1} parent=67 // pred_region
          %2025 = vsyncadd [#allocation8], 0
          %s2026 = sshll.u32 [#allocation12], 4
          %s2027 = int_to_ptr.vmem [resolvable:$true] %s2026
          %s2028 = sshll.u32 %s12, 4
          %s2029 = int_to_ptr.hbm [resolvable:$true] %s2028
          %2034 = dma.vmem_to_hbm [thread:$0]  %s2027, 256, %s2029, [#allocation8], 128, 128, 8
        $region126: #{moco_forward.1} parent=67 // pred_fallthru
          _
        // Predicated region
        $region127: #{moco_forward.1} parent=67 // pred_check
          %p2035 = pneg %p328
        $region128: #{moco_forward.1} parent=67 // pred_check_branch
          %2037 = sbr.rel (%p2035) target = $region130
        $region129: #{moco_forward.1} parent=67 // pred_region
          %2039 = vsyncadd [#allocation14], 0
          %s2040 = sshll.u32 [#allocation13], 4
          %s2041 = int_to_ptr.vmem [resolvable:$true] %s2040
          %s2042 = sshll.u32 %s13, 4
          %s2043 = int_to_ptr.hbm [resolvable:$true] %s2042
          %2048 = dma.vmem_to_hbm [thread:$0]  %s2041, 256, %s2043, [#allocation14], 128, 128, 8
        $region130: #{moco_forward.1} parent=67 // pred_fallthru
          _
        // Predicated region
        $region131: #{moco_forward.1} parent=67 // pred_check
          %p2049 = pneg %p349
        $region132: #{moco_forward.1} parent=67 // pred_check_branch
          %2051 = sbr.rel (%p2049) target = $region134
        $region133: #{moco_forward.1} parent=67 // pred_region
          _
        $region134: #{moco_forward.1} parent=67 // pred_fallthru
          _
        // Predicated region
        $region135: #{moco_forward.1} parent=67 // pred_check
          %p2052 = pneg %p375
        $region136: #{moco_forward.1} parent=67 // pred_check_branch
          %2054 = sbr.rel (%p2052) target = $region138
        $region137: #{moco_forward.1} parent=67 // pred_region
          %s2055 = smul.addr %s37, 8
          %s2056 = scalar_lea.vmem %s15, %s2055
          // Predicated region
          $region139: #{moco_forward.1} parent=137 // pred_check
            _
          $region140: #{moco_forward.1} parent=137 // pred_check_branch
            %2058 = sbr.rel (0) target = $region142
          $region141: #{moco_forward.1} parent=137 // pred_region
            // Predicated region
            $region143: #{moco_forward.1} parent=141 // pred_check
              _
            $region144: #{moco_forward.1} parent=141 // pred_check_branch
              %2060 = sbr.rel (0) target = $region146
            $region145: #{moco_forward.1} parent=141 // pred_region
              // Predicated region
              $region158: #{moco_forward.1} parent=145 // pred_check
                _
              $region159: #{moco_forward.1} parent=145 // pred_check_branch
                %2078 = sbr.rel (0) target = $region161
              $region160: #{moco_forward.1} parent=145 // pred_region
                loop: start=0, step=1, limit=1
                $region162: #{moco_forward.1} parent=160 // loop_pre_header
                  _
                $region163: #{moco_forward.1} parent=160 // loop_header
                  %s2080 = sphi 0, %s2084
                  %p2081 = scmp.ge.s32.totalorder %s2080, 1
                  %s2085 = sphi %s2020, %s2020
                  %s2086 = sphi %s2056, %s2056
                $region164: #{moco_forward.1} parent=160 // loop_header_branch
                  %2083 = sbr.rel (%p2081) target = $region168
                $region165: #{moco_forward.1} parent=160 // loop_body
                  %v2087 = vld [vmem:[%s2085] sm:$0xff]
                  %2088 = vst [vmem:[%s2086] sm:$0xff] %v2087
                  %v2089 = vld [vmem:[%s2085 + $0x8] sm:$0xff]
                  %2090 = vst [vmem:[%s2086 + $0x18] sm:$0xff] %v2089
                $region166: #{moco_forward.1} parent=160 // loop_footer
                  %s2084 = sadd.s32 1, %s2080
                $region167: #{moco_forward.1} parent=160 // loop_footer_branch
                  %2079 = sbr.rel target = $region163
                $region168: #{moco_forward.1} parent=160 // loop_exit
                  _
              $region161: #{moco_forward.1} parent=145 // pred_fallthru
                _
              // Predicated region
              $region169: #{moco_forward.1} parent=145 // pred_check
                _
              $region170: #{moco_forward.1} parent=145 // pred_check_branch
                %2092 = sbr.rel target = $region172
              $region171: #{moco_forward.1} parent=145 // pred_region
                _
              $region172: #{moco_forward.1} parent=145 // pred_fallthru
                _
            $region146: #{moco_forward.1} parent=141 // pred_fallthru
              _
            // Predicated region
            $region147: #{moco_forward.1} parent=141 // pred_check
              _
            $region148: #{moco_forward.1} parent=141 // pred_check_branch
              %2062 = sbr.rel target = $region150
            $region149: #{moco_forward.1} parent=141 // pred_region
              %s2064 = ssub.s32 256, 1
              loop: start=0, step=1, limit=1
              $region151: #{moco_forward.1} parent=149 // loop_pre_header
                _
              $region152: #{moco_forward.1} parent=149 // loop_header
                %s2066 = sphi 0, %s2070
                %p2067 = scmp.ge.s32.totalorder %s2066, 1
                %s2071 = sphi %s2020, %s2020
                %s2072 = sphi %s2056, %s2056
              $region153: #{moco_forward.1} parent=149 // loop_header_branch
                %2069 = sbr.rel (%p2067) target = $region157
              $region154: #{moco_forward.1} parent=149 // loop_body
                %v2073 = vld [vmem:[%s2071] sm:%s2064]
                %2074 = vst [vmem:[%s2072] sm:%s2064] %v2073
                %v2075 = vld [vmem:[%s2071 + $0x8] sm:%s2064]
                %2076 = vst [vmem:[%s2072 + $0x18] sm:%s2064] %v2075
              $region155: #{moco_forward.1} parent=149 // loop_footer
                %s2070 = sadd.s32 1, %s2066
              $region156: #{moco_forward.1} parent=149 // loop_footer_branch
                %2065 = sbr.rel target = $region152
              $region157: #{moco_forward.1} parent=149 // loop_exit
                _
            $region150: #{moco_forward.1} parent=141 // pred_fallthru
              _
          $region142: #{moco_forward.1} parent=137 // pred_fallthru
            _
          %2093 = vnop
        $region138: #{moco_forward.1} parent=67 // pred_fallthru
          _
        // Predicated region
        $region173: #{moco_forward.1} parent=67 // pred_check
          %p2094 = pneg %p396
        $region174: #{moco_forward.1} parent=67 // pred_check_branch
          %2096 = sbr.rel (%p2094) target = $region176
        $region175: #{moco_forward.1} parent=67 // pred_region
          _
        $region176: #{moco_forward.1} parent=67 // pred_fallthru
          _
        // Predicated region
        $region177: #{moco_forward.1} parent=67 // pred_check
          %p2097 = pneg %p417
        $region178: #{moco_forward.1} parent=67 // pred_check_branch
          %2099 = sbr.rel (%p2097) target = $region180
        $region179: #{moco_forward.1} parent=67 // pred_region
          _
        $region180: #{moco_forward.1} parent=67 // pred_fallthru
          _
        // Predicated region
        $region181: #{moco_forward.1} parent=67 // pred_check
          %p2100 = pneg %p438
        $region182: #{moco_forward.1} parent=67 // pred_check_branch
          %2102 = sbr.rel (%p2100) target = $region184
        $region183: #{moco_forward.1} parent=67 // pred_region
          %2104 = vsyncadd [#allocation14], 0
          %s2105 = sshll.u32 [#allocation16], 4
          %s2106 = int_to_ptr.vmem [resolvable:$true] %s2105
          %s2107 = sshll.u32 %s18, 4
          %s2108 = int_to_ptr.hbm [resolvable:$true] %s2107
          %2113 = dma.vmem_to_hbm [thread:$0]  %s2106, 2048, %s2108, [#allocation14], 128, 128, 8
        $region184: #{moco_forward.1} parent=67 // pred_fallthru
          _
        // Predicated region
        $region185: #{moco_forward.1} parent=67 // pred_check
          %p2114 = pneg %p459
        $region186: #{moco_forward.1} parent=67 // pred_check_branch
          %2116 = sbr.rel (%p2114) target = $region188
        $region187: #{moco_forward.1} parent=67 // pred_region
          _
        $region188: #{moco_forward.1} parent=67 // pred_fallthru
          _
        // Predicated region
        $region189: #{moco_forward.1} parent=67 // pred_check
          %p2117 = pneg %p307
        $region190: #{moco_forward.1} parent=67 // pred_check_branch
          %2119 = sbr.rel (%p2117) target = $region192
        $region191: #{moco_forward.1} parent=67 // pred_region
          %2121 = dma.done [#allocation8], 256
        $region192: #{moco_forward.1} parent=67 // pred_fallthru
          _
        // Predicated region
        $region193: #{moco_forward.1} parent=67 // pred_check
          %p2122 = pneg %p328
        $region194: #{moco_forward.1} parent=67 // pred_check_branch
          %2124 = sbr.rel (%p2122) target = $region196
        $region195: #{moco_forward.1} parent=67 // pred_region
          %2126 = dma.done [#allocation14], 256
        $region196: #{moco_forward.1} parent=67 // pred_fallthru
          _
        // Predicated region
        $region197: #{moco_forward.1} parent=67 // pred_check
          %p2127 = pneg %p349
        $region198: #{moco_forward.1} parent=67 // pred_check_branch
          %2129 = sbr.rel (%p2127) target = $region200
        $region199: #{moco_forward.1} parent=67 // pred_region
          _
        $region200: #{moco_forward.1} parent=67 // pred_fallthru
          _
        // Predicated region
        $region201: #{moco_forward.1} parent=67 // pred_check
          %p2130 = pneg %p396
        $region202: #{moco_forward.1} parent=67 // pred_check_branch
          %2132 = sbr.rel (%p2130) target = $region204
        $region203: #{moco_forward.1} parent=67 // pred_region
          _
        $region204: #{moco_forward.1} parent=67 // pred_fallthru
          _
        // Predicated region
        $region205: #{moco_forward.1} parent=67 // pred_check
          %p2133 = pneg %p417
        $region206: #{moco_forward.1} parent=67 // pred_check_branch
          %2135 = sbr.rel (%p2133) target = $region208
        $region207: #{moco_forward.1} parent=67 // pred_region
          _
        $region208: #{moco_forward.1} parent=67 // pred_fallthru
          _
        // Predicated region
        $region209: #{moco_forward.1} parent=67 // pred_check
          %p2136 = pneg %p438
        $region210: #{moco_forward.1} parent=67 // pred_check_branch
          %2138 = sbr.rel (%p2136) target = $region212
        $region211: #{moco_forward.1} parent=67 // pred_region
          %2140 = dma.done [#allocation14], 2048
        $region212: #{moco_forward.1} parent=67 // pred_fallthru
          _
        // Predicated region
        $region213: #{moco_forward.1} parent=67 // pred_check
          %p2141 = pneg %p459
        $region214: #{moco_forward.1} parent=67 // pred_check_branch
          %2143 = sbr.rel (%p2141) target = $region216
        $region215: #{moco_forward.1} parent=67 // pred_region
          _
        $region216: #{moco_forward.1} parent=67 // pred_fallthru
          _
      $region68: #{moco_forward.1} parent=5 // pred_fallthru
        _
      %p2144 = scmp.le.s32.totalorder 2, %s32
      // Predicated region
      $region217: #{moco_forward.1} parent=5 // pred_check
        %p2145 = pneg %p2144
      $region218: #{moco_forward.1} parent=5 // pred_check_branch
        %2147 = sbr.rel (%p2145) target = $region220
      $region219: #{moco_forward.1} parent=5 // pred_region
        %s2148 = ssub.s32 %s32, 2
        // Predicated region
        $region221: #{moco_forward.1} parent=219 // pred_check
          %p2149 = pneg %p381
        $region222: #{moco_forward.1} parent=219 // pred_check_branch
          %2151 = sbr.rel (%p2149) target = $region224
        $region223: #{moco_forward.1} parent=219 // pred_region
          %s2152 = sand.u32 %s366, 1
          %s2153 = sand.u32 %s366, 1
          %s2154 = smul.addr %s2153, 16
          %s2155 = scalar_lea.vmem [#allocation15], %s2154
        $region224: #{moco_forward.1} parent=219 // pred_fallthru
          _
      $region220: #{moco_forward.1} parent=5 // pred_fallthru
        _
    $region6: #{moco_forward.1} parent=1 // loop_footer
      %s36 = sadd.s32 1, %s32
    $region7: #{moco_forward.1} parent=1 // loop_footer_branch
      %31 = sbr.rel target = $region3
    $region8: #{moco_forward.1} parent=1 // loop_exit
      _
    %2156 = vsyncpa [#allocation7], 1
    %s2157 = scalar_lea.sflag [#allocation7], 1
    %2158 = vsyncpa %s2157, 1
    %2159 = vsyncpa [#allocation10], 1
    %2160 = vsyncpa [#allocation8], 1
    %s2161 = scalar_lea.sflag [#allocation8], 1
    %2162 = vsyncpa %s2161, 1
    %2163 = vsyncpa [#allocation14], 1
  %2164 = vsyncmov [#allocation4]
  %s2165 = vpop.sfrf %2164
  %p2166 = scmp.eq.s32.totalorder %s2165, 0
  %p2167 = pneg %p2166
  %2169 = shalt.err (%p2167)

</llo_original>
